<compile_context>
chip_gen: v7x
topology: tpu7x:2x2x1
jax: 0.10.0
libtpu: 0.0.40
codegen_flags: <defaults>
</compile_context>

<pallas_src>
import jax
import jax.numpy as jnp
import numpy as np
from jax.experimental import pallas as pl
from jax.experimental.pallas import tpu as pltpu

EPS = 1e-5  # nn.InstanceNorm2d default eps


def _make_kernel(num_blocks, H, W, C):
    WC = W * C

    def kernel(x_ref, w1_ref, b1_ref, w2_ref, b2_ref, avg_ref, o_ref, res_ref):
        # Row-shift matrices, built once per image ((H, H) is a single tile).
        r = jax.lax.broadcasted_iota(jnp.int32, (H, H), 0)
        c = jax.lax.broadcasted_iota(jnp.int32, (H, H), 1)
        s_up = (c == r - 1).astype(jnp.float32)   # (s_up @ x)[h] = x[h-1], 0 at h=0
        s_dn = (c == r + 1).astype(jnp.float32)   # (s_dn @ x)[h] = x[h+1], 0 at h=H-1
        avg = avg_ref[...]                        # (WC, WC) channel-mean broadcast matrix

        def conv3x3(x2d, w_ref, b_ref, blk):
            # x2d: (H, WC).  Single fused im2col matmul over all 9 taps.
            up = jnp.dot(s_up, x2d, preferred_element_type=jnp.float32)
            dn = jnp.dot(s_dn, x2d, preferred_element_type=jnp.float32)
            lhs = jnp.concatenate([up, x2d, dn], axis=1)          # (H, 3*WC), 128-aligned
            return jnp.dot(lhs, w_ref[blk],
                           preferred_element_type=jnp.float32) + b_ref[blk]

        def instance_norm(x2d):
            # Per-channel mean over (H, W); `avg` scatters it back to every lane.
            m = jnp.dot(jnp.sum(x2d, axis=0, keepdims=True), avg,
                        preferred_element_type=jnp.float32)       # (1, WC)
            d = x2d - m
            v = jnp.dot(jnp.sum(d * d, axis=0, keepdims=True), avg,
                        preferred_element_type=jnp.float32)       # biased variance
            return d * jax.lax.rsqrt(v + EPS)

        cur = x_ref[0]                                            # (H, WC) float32
        for blk in range(num_blocks):
            res_ref[...] = cur                                    # residual off the vreg file
            y = jnp.maximum(instance_norm(conv3x3(cur, w1_ref, b1_ref, blk)), 0.0)
            y = instance_norm(conv3x3(y, w2_ref, b2_ref, blk))
            cur = y + res_ref[...]
        o_ref[0] = cur

    return kernel


def _banded_conv_weights(w, W):
    """(NB, 3, 3, Cin, Cout) HWIO taps -> (NB, 3*W*C, W*C) banded im2col matrix.

    big[nb, dy*W*C + (wo+dx-1)*C + ci, wo*C + co] = w[nb, dy, dx, ci, co]
    (entries with wo+dx-1 outside [0, W) stay zero -> the conv's zero padding in W).
    """
    w = np.asarray(w, dtype=np.float32)
    NB, _, _, C, _ = w.shape
    WC = W * C
    big = np.zeros((NB, 3 * WC, WC), np.float32)
    for dy in range(3):
        for dx in range(3):
            for wo in range(W):
                wi = wo + dx - 1
                if 0 <= wi < W:
                    big[:, dy * WC + wi * C: dy * WC + (wi + 1) * C,
                        wo * C:(wo + 1) * C] = w[:, dy, dx]
    return jnp.asarray(big)


def _channel_avg_matrix(H, W, C):
    """(W*C, W*C) matrix: M[i, j] = 1/(H*W) if i%C == j%C else 0."""
    WC = W * C
    lane = np.arange(WC)
    m = (lane[:, None] % C == lane[None, :] % C).astype(np.float32) / float(H * W)
    return jnp.asarray(m)


def res_blocks_forward(x_nchw, w1, b1, w2, b2):
    """x_nchw: (N, C, H, W) f32.  w*: (NB, 3, 3, Cin, Cout) HWIO, b*: (NB, C)."""
    x = jnp.transpose(x_nchw, (0, 2, 3, 1)).astype(jnp.float32)   # NHWC
    N, H, W, C = x.shape
    NB = w1.shape[0]
    WC = W * C

    x_folded = x.reshape(N, H, WC)                                # lane-dense I/O slab
    w1b = _banded_conv_weights(w1, W)
    w2b = _banded_conv_weights(w2, W)
    b1f = jnp.tile(jnp.asarray(b1, jnp.float32), (1, W)).reshape(NB, 1, WC)
    b2f = jnp.tile(jnp.asarray(b2, jnp.float32), (1, W)).reshape(NB, 1, WC)
    avg = _channel_avg_matrix(H, W, C)

    kernel = _make_kernel(NB, H, W, C)
    grid_spec = pltpu.PrefetchScalarGridSpec(
        num_scalar_prefetch=0,
        grid=(N,),
        in_specs=[
            pl.BlockSpec((1, H, WC), lambda n: (n, 0, 0)),            # x (one image)
            pl.BlockSpec((NB, 3 * WC, WC), lambda n: (0, 0, 0)),      # banded w (conv1)
            pl.BlockSpec((NB, 1, WC), lambda n: (0, 0, 0)),           # bias (conv1)
            pl.BlockSpec((NB, 3 * WC, WC), lambda n: (0, 0, 0)),      # banded w (conv2)
            pl.BlockSpec((NB, 1, WC), lambda n: (0, 0, 0)),           # bias (conv2)
            pl.BlockSpec((WC, WC), lambda n: (0, 0)),                 # channel-avg matrix
        ],
        out_specs=pl.BlockSpec((1, H, WC), lambda n: (n, 0, 0)),
        scratch_shapes=[pltpu.VMEM((H, WC), jnp.float32)],            # residual slab
    )
    out = pl.pallas_call(
        kernel,
        out_shape=jax.ShapeDtypeStruct((N, H, WC), jnp.float32),
        grid_spec=grid_spec,
        compiler_params=pltpu.CompilerParams(dimension_semantics=("parallel",)),
    )(x_folded, w1b, b1f, w2b, b2f, avg)
    return jnp.transpose(out.reshape(N, H, W, C), (0, 3, 1, 2))       # back to NCHW


def res_blocks_reference(x, w1, b1, w2, b2):
    """Pure-JAX (XLA conv) reference for correctness checking."""
    NB = w1.shape[0]

    def conv(x, w, b):
        y = jax.lax.conv_general_dilated(
            x, w, window_strides=(1, 1), padding=((1, 1), (1, 1)),
            dimension_numbers=("NCHW", "HWIO", "NCHW"))
        return y + b[None, :, None, None]

    def inorm(x):
        m = jnp.mean(x, axis=(2, 3), keepdims=True)
        v = jnp.mean((x - m) ** 2, axis=(2, 3), keepdims=True)
        return (x - m) / jnp.sqrt(v + EPS)

    cur = x
    for i in range(NB):
        res = cur
        y = jnp.maximum(inorm(conv(cur, w1[i], b1[i])), 0.0)
        y = inorm(conv(y, w2[i], b2[i]))
        cur = y + res
    return cur


if __name__ == "__main__":
    N, C, H, W = 2, 8, 16, 16          # W*C = 128 -> fully lane-dense slabs
    NUM_BLOCKS = 2

    key = jax.random.PRNGKey(0)
    k1, k2, k3, k4, k5 = jax.random.split(key, 5)
    fan_in = C * 3 * 3
    bound = 1.0 / np.sqrt(fan_in)
    # Deterministic synthetic parameters (PyTorch-conv-like uniform init), HWIO layout.
    w1 = jax.random.uniform(k1, (NUM_BLOCKS, 3, 3, C, C), jnp.float32, -bound, bound)
    b1 = jax.random.uniform(k2, (NUM_BLOCKS, C), jnp.float32, -bound, bound)
    w2 = jax.random.uniform(k3, (NUM_BLOCKS, 3, 3, C, C), jnp.float32, -bound, bound)
    b2 = jax.random.uniform(k4, (NUM_BLOCKS, C), jnp.float32, -bound, bound)
    x = jax.random.normal(k5, (N, C, H, W), jnp.float32)

    out = jax.block_until_ready(res_blocks_forward(x, w1, b1, w2, b2))
    ref = jax.block_until_ready(res_blocks_reference(x, w1, b1, w2, b2))
    np.testing.assert_allclose(np.asarray(out), np.asarray(ref), rtol=1e-4, atol=1e-4)
    print("KERNEL_OK")
</pallas_src>

<mosaic_0001>
module attributes {stable_mosaic.version = 11 : i64} {
  func.func @kernel(%arg0: i32, %arg1: memref<1x16x128xf32, #tpu.memory_space<vmem>>, %arg2: memref<2x384x128xf32, #tpu.memory_space<vmem>>, %arg3: memref<2x1x128xf32, #tpu.memory_space<vmem>>, %arg4: memref<2x384x128xf32, #tpu.memory_space<vmem>>, %arg5: memref<2x1x128xf32, #tpu.memory_space<vmem>>, %arg6: memref<128x128xf32, #tpu.memory_space<vmem>>, %arg7: memref<1x16x128xf32, #tpu.memory_space<vmem>>, %arg8: memref<16x128xf32, #tpu.memory_space<vmem>>) attributes {dimension_semantics = [#tpu.dimension_semantics<parallel>], iteration_bounds = array<i64: 2>, scalar_prefetch = 0 : i64, scratch_operands = 1 : i64, tpu.core_type = #tpu.core_type<tc>, window_params = [{transform_indices = @transform_0, window_bounds = array<i64: 1, 16, 128>}, {pipeline_mode = #tpu.pipeline_mode<synchronous>, transform_indices = @transform_1, window_bounds = array<i64: 2, 384, 128>}, {pipeline_mode = #tpu.pipeline_mode<synchronous>, transform_indices = @transform_2, window_bounds = array<i64: 2, 1, 128>}, {pipeline_mode = #tpu.pipeline_mode<synchronous>, transform_indices = @transform_3, window_bounds = array<i64: 2, 384, 128>}, {pipeline_mode = #tpu.pipeline_mode<synchronous>, transform_indices = @transform_4, window_bounds = array<i64: 2, 1, 128>}, {pipeline_mode = #tpu.pipeline_mode<synchronous>, transform_indices = @transform_5, window_bounds = array<i64: 128, 128>}, {transform_indices = @transform_6, window_bounds = array<i64: 1, 16, 128>}]} {
    %0 = tpu.iota {dimensions = array<i32: 0>} : vector<16x16xi32>
    %1 = tpu.iota {dimensions = array<i32: 1>} : vector<16x16xi32>
    %c1_i32 = arith.constant 1 : i32
    %2 = vector.broadcast %c1_i32 : i32 to vector<16x16xi32>
    %3 = arith.subi %0, %2 : vector<16x16xi32>
    %4 = arith.cmpi eq, %1, %3 : vector<16x16xi32>
    %5 = arith.extui %4 : vector<16x16xi1> to vector<16x16xi32>
    %6 = arith.sitofp %5 : vector<16x16xi32> to vector<16x16xf32>
    %c1_i32_0 = arith.constant 1 : i32
    %7 = vector.broadcast %c1_i32_0 : i32 to vector<16x16xi32>
    %8 = arith.addi %0, %7 : vector<16x16xi32>
    %9 = arith.cmpi eq, %1, %8 : vector<16x16xi32>
    %10 = arith.extui %9 : vector<16x16xi1> to vector<16x16xi32>
    %11 = arith.sitofp %10 : vector<16x16xi32> to vector<16x16xf32>
    %c0 = arith.constant 0 : index
    %c0_1 = arith.constant 0 : index
    %12 = vector.load %arg6[%c0, %c0_1] : memref<128x128xf32, #tpu.memory_space<vmem>>, vector<128x128xf32>
    %c0_2 = arith.constant 0 : index
    %c0_3 = arith.constant 0 : index
    %c0_4 = arith.constant 0 : index
    %13 = vector.load %arg1[%c0_2, %c0_3, %c0_4] : memref<1x16x128xf32, #tpu.memory_space<vmem>>, vector<1x16x128xf32>
    %14 = vector.shape_cast %13 : vector<1x16x128xf32> to vector<16x128xf32>
    %c0_5 = arith.constant 0 : index
    %c0_6 = arith.constant 0 : index
    %15 = vector.load %arg8[%c0_5, %c0_6] : memref<16x128xf32, #tpu.memory_space<vmem>>, vector<16x128xf32>
    tpu.vector_store %arg8[%c0_5, %c0_6], %14 {strides = array<i32>} : memref<16x128xf32, #tpu.memory_space<vmem>>, vector<16x128xf32>,
    %cst = arith.constant dense<0.000000e+00> : vector<16x128xf32>
    %16 = tpu.matmul %6, %14, %cst {dimension_numbers = #tpu.dot_dimension_numbers<[1], [0], [0], [1], [0, 0, 1, 1], [], []>} : vector<16x16xf32>, vector<16x128xf32>, vector<16x128xf32> -> vector<16x128xf32>
    %cst_7 = arith.constant dense<0.000000e+00> : vector<16x128xf32>
    %17 = tpu.matmul %11, %14, %cst_7 {dimension_numbers = #tpu.dot_dimension_numbers<[1], [0], [0], [1], [0, 0, 1, 1], [], []>} : vector<16x16xf32>, vector<16x128xf32>, vector<16x128xf32> -> vector<16x128xf32>
    %18 = tpu.concatenate %16, %14, %17 in 1 : vector<16x128xf32>, vector<16x128xf32>, vector<16x128xf32> -> vector<16x384xf32>
    %c0_8 = arith.constant 0 : index
    %c0_9 = arith.constant 0 : index
    %c0_10 = arith.constant 0 : index
    %19 = vector.load %arg2[%c0_8, %c0_9, %c0_10] : memref<2x384x128xf32, #tpu.memory_space<vmem>>, vector<1x384x128xf32>
    %20 = vector.shape_cast %19 : vector<1x384x128xf32> to vector<384x128xf32>
    %cst_11 = arith.constant dense<0.000000e+00> : vector<16x128xf32>
    %21 = tpu.matmul %18, %20, %cst_11 {dimension_numbers = #tpu.dot_dimension_numbers<[1], [0], [0], [1], [0, 0, 1, 1], [], []>} : vector<16x384xf32>, vector<384x128xf32>, vector<16x128xf32> -> vector<16x128xf32>
    %c0_12 = arith.constant 0 : index
    %c0_13 = arith.constant 0 : index
    %c0_14 = arith.constant 0 : index
    %22 = vector.load %arg3[%c0_12, %c0_13, %c0_14] : memref<2x1x128xf32, #tpu.memory_space<vmem>>, vector<1x1x128xf32>
    %23 = vector.shape_cast %22 : vector<1x1x128xf32> to vector<1x128xf32>
    %24 = vector.broadcast %23 : vector<1x128xf32> to vector<16x128xf32>
    %25 = arith.addf %21, %24 : vector<16x128xf32>
    %cst_15 = arith.constant dense<0.000000e+00> : vector<128xf32>
    %26 = vector.multi_reduction <add>, %25, %cst_15 [0] : vector<16x128xf32> to vector<128xf32>
    %27 = vector.shape_cast %26 : vector<128xf32> to vector<1x128xf32>
    %cst_16 = arith.constant dense<0.000000e+00> : vector<1x128xf32>
    %28 = tpu.matmul %27, %12, %cst_16 {dimension_numbers = #tpu.dot_dimension_numbers<[1], [0], [0], [1], [0, 0, 1, 1], [], []>} : vector<1x128xf32>, vector<128x128xf32>, vector<1x128xf32> -> vector<1x128xf32>
    %29 = vector.broadcast %28 : vector<1x128xf32> to vector<16x128xf32>
    %30 = arith.subf %25, %29 : vector<16x128xf32>
    %31 = arith.mulf %30, %30 : vector<16x128xf32>
    %cst_17 = arith.constant dense<0.000000e+00> : vector<128xf32>
    %32 = vector.multi_reduction <add>, %31, %cst_17 [0] : vector<16x128xf32> to vector<128xf32>
    %33 = vector.shape_cast %32 : vector<128xf32> to vector<1x128xf32>
    %cst_18 = arith.constant dense<0.000000e+00> : vector<1x128xf32>
    %34 = tpu.matmul %33, %12, %cst_18 {dimension_numbers = #tpu.dot_dimension_numbers<[1], [0], [0], [1], [0, 0, 1, 1], [], []>} : vector<1x128xf32>, vector<128x128xf32>, vector<1x128xf32> -> vector<1x128xf32>
    %cst_19 = arith.constant 9.99999974E-6 : f32
    %35 = vector.broadcast %cst_19 : f32 to vector<1x128xf32>
    %36 = arith.addf %34, %35 : vector<1x128xf32>
    %37 = math.rsqrt %36 : vector<1x128xf32>
    %38 = vector.broadcast %37 : vector<1x128xf32> to vector<16x128xf32>
    %39 = arith.mulf %30, %38 : vector<16x128xf32>
    %cst_20 = arith.constant 0.000000e+00 : f32
    %40 = vector.broadcast %cst_20 : f32 to vector<16x128xf32>
    %41 = arith.maximumf %39, %40 : vector<16x128xf32>
    %cst_21 = arith.constant dense<0.000000e+00> : vector<16x128xf32>
    %42 = tpu.matmul %6, %41, %cst_21 {dimension_numbers = #tpu.dot_dimension_numbers<[1], [0], [0], [1], [0, 0, 1, 1], [], []>} : vector<16x16xf32>, vector<16x128xf32>, vector<16x128xf32> -> vector<16x128xf32>
    %cst_22 = arith.constant dense<0.000000e+00> : vector<16x128xf32>
    %43 = tpu.matmul %11, %41, %cst_22 {dimension_numbers = #tpu.dot_dimension_numbers<[1], [0], [0], [1], [0, 0, 1, 1], [], []>} : vector<16x16xf32>, vector<16x128xf32>, vector<16x128xf32> -> vector<16x128xf32>
    %44 = tpu.concatenate %42, %41, %43 in 1 : vector<16x128xf32>, vector<16x128xf32>, vector<16x128xf32> -> vector<16x384xf32>
    %c0_23 = arith.constant 0 : index
    %c0_24 = arith.constant 0 : index
    %c0_25 = arith.constant 0 : index
    %45 = vector.load %arg4[%c0_23, %c0_24, %c0_25] : memref<2x384x128xf32, #tpu.memory_space<vmem>>, vector<1x384x128xf32>
    %46 = vector.shape_cast %45 : vector<1x384x128xf32> to vector<384x128xf32>
    %cst_26 = arith.constant dense<0.000000e+00> : vector<16x128xf32>
    %47 = tpu.matmul %44, %46, %cst_26 {dimension_numbers = #tpu.dot_dimension_numbers<[1], [0], [0], [1], [0, 0, 1, 1], [], []>} : vector<16x384xf32>, vector<384x128xf32>, vector<16x128xf32> -> vector<16x128xf32>
    %c0_27 = arith.constant 0 : index
    %c0_28 = arith.constant 0 : index
    %c0_29 = arith.constant 0 : index
    %48 = vector.load %arg5[%c0_27, %c0_28, %c0_29] : memref<2x1x128xf32, #tpu.memory_space<vmem>>, vector<1x1x128xf32>
    %49 = vector.shape_cast %48 : vector<1x1x128xf32> to vector<1x128xf32>
    %50 = vector.broadcast %49 : vector<1x128xf32> to vector<16x128xf32>
    %51 = arith.addf %47, %50 : vector<16x128xf32>
    %cst_30 = arith.constant dense<0.000000e+00> : vector<128xf32>
    %52 = vector.multi_reduction <add>, %51, %cst_30 [0] : vector<16x128xf32> to vector<128xf32>
    %53 = vector.shape_cast %52 : vector<128xf32> to vector<1x128xf32>
    %cst_31 = arith.constant dense<0.000000e+00> : vector<1x128xf32>
    %54 = tpu.matmul %53, %12, %cst_31 {dimension_numbers = #tpu.dot_dimension_numbers<[1], [0], [0], [1], [0, 0, 1, 1], [], []>} : vector<1x128xf32>, vector<128x128xf32>, vector<1x128xf32> -> vector<1x128xf32>
    %55 = vector.broadcast %54 : vector<1x128xf32> to vector<16x128xf32>
    %56 = arith.subf %51, %55 : vector<16x128xf32>
    %57 = arith.mulf %56, %56 : vector<16x128xf32>
    %cst_32 = arith.constant dense<0.000000e+00> : vector<128xf32>
    %58 = vector.multi_reduction <add>, %57, %cst_32 [0] : vector<16x128xf32> to vector<128xf32>
    %59 = vector.shape_cast %58 : vector<128xf32> to vector<1x128xf32>
    %cst_33 = arith.constant dense<0.000000e+00> : vector<1x128xf32>
    %60 = tpu.matmul %59, %12, %cst_33 {dimension_numbers = #tpu.dot_dimension_numbers<[1], [0], [0], [1], [0, 0, 1, 1], [], []>} : vector<1x128xf32>, vector<128x128xf32>, vector<1x128xf32> -> vector<1x128xf32>
    %cst_34 = arith.constant 9.99999974E-6 : f32
    %61 = vector.broadcast %cst_34 : f32 to vector<1x128xf32>
    %62 = arith.addf %60, %61 : vector<1x128xf32>
    %63 = math.rsqrt %62 : vector<1x128xf32>
    %64 = vector.broadcast %63 : vector<1x128xf32> to vector<16x128xf32>
    %65 = arith.mulf %56, %64 : vector<16x128xf32>
    %c0_35 = arith.constant 0 : index
    %c0_36 = arith.constant 0 : index
    %66 = vector.load %arg8[%c0_35, %c0_36] : memref<16x128xf32, #tpu.memory_space<vmem>>, vector<16x128xf32>
    %67 = arith.addf %65, %66 : vector<16x128xf32>
    %c0_37 = arith.constant 0 : index
    %c0_38 = arith.constant 0 : index
    %68 = vector.load %arg8[%c0_37, %c0_38] : memref<16x128xf32, #tpu.memory_space<vmem>>, vector<16x128xf32>
    tpu.vector_store %arg8[%c0_37, %c0_38], %67 {strides = array<i32>} : memref<16x128xf32, #tpu.memory_space<vmem>>, vector<16x128xf32>,
    %cst_39 = arith.constant dense<0.000000e+00> : vector<16x128xf32>
    %69 = tpu.matmul %6, %67, %cst_39 {dimension_numbers = #tpu.dot_dimension_numbers<[1], [0], [0], [1], [0, 0, 1, 1], [], []>} : vector<16x16xf32>, vector<16x128xf32>, vector<16x128xf32> -> vector<16x128xf32>
    %cst_40 = arith.constant dense<0.000000e+00> : vector<16x128xf32>
    %70 = tpu.matmul %11, %67, %cst_40 {dimension_numbers = #tpu.dot_dimension_numbers<[1], [0], [0], [1], [0, 0, 1, 1], [], []>} : vector<16x16xf32>, vector<16x128xf32>, vector<16x128xf32> -> vector<16x128xf32>
    %71 = tpu.concatenate %69, %67, %70 in 1 : vector<16x128xf32>, vector<16x128xf32>, vector<16x128xf32> -> vector<16x384xf32>
    %c1 = arith.constant 1 : index
    %c0_41 = arith.constant 0 : index
    %c0_42 = arith.constant 0 : index
    %72 = vector.load %arg2[%c1, %c0_41, %c0_42] : memref<2x384x128xf32, #tpu.memory_space<vmem>>, vector<1x384x128xf32>
    %73 = vector.shape_cast %72 : vector<1x384x128xf32> to vector<384x128xf32>
    %cst_43 = arith.constant dense<0.000000e+00> : vector<16x128xf32>
    %74 = tpu.matmul %71, %73, %cst_43 {dimension_numbers = #tpu.dot_dimension_numbers<[1], [0], [0], [1], [0, 0, 1, 1], [], []>} : vector<16x384xf32>, vector<384x128xf32>, vector<16x128xf32> -> vector<16x128xf32>
    %c1_44 = arith.constant 1 : index
    %c0_45 = arith.constant 0 : index
    %c0_46 = arith.constant 0 : index
    %75 = vector.load %arg3[%c1_44, %c0_45, %c0_46] : memref<2x1x128xf32, #tpu.memory_space<vmem>>, vector<1x1x128xf32>
    %76 = vector.shape_cast %75 : vector<1x1x128xf32> to vector<1x128xf32>
    %77 = vector.broadcast %76 : vector<1x128xf32> to vector<16x128xf32>
    %78 = arith.addf %74, %77 : vector<16x128xf32>
    %cst_47 = arith.constant dense<0.000000e+00> : vector<128xf32>
    %79 = vector.multi_reduction <add>, %78, %cst_47 [0] : vector<16x128xf32> to vector<128xf32>
    %80 = vector.shape_cast %79 : vector<128xf32> to vector<1x128xf32>
    %cst_48 = arith.constant dense<0.000000e+00> : vector<1x128xf32>
    %81 = tpu.matmul %80, %12, %cst_48 {dimension_numbers = #tpu.dot_dimension_numbers<[1], [0], [0], [1], [0, 0, 1, 1], [], []>} : vector<1x128xf32>, vector<128x128xf32>, vector<1x128xf32> -> vector<1x128xf32>
    %82 = vector.broadcast %81 : vector<1x128xf32> to vector<16x128xf32>
    %83 = arith.subf %78, %82 : vector<16x128xf32>
    %84 = arith.mulf %83, %83 : vector<16x128xf32>
    %cst_49 = arith.constant dense<0.000000e+00> : vector<128xf32>
    %85 = vector.multi_reduction <add>, %84, %cst_49 [0] : vector<16x128xf32> to vector<128xf32>
    %86 = vector.shape_cast %85 : vector<128xf32> to vector<1x128xf32>
    %cst_50 = arith.constant dense<0.000000e+00> : vector<1x128xf32>
    %87 = tpu.matmul %86, %12, %cst_50 {dimension_numbers = #tpu.dot_dimension_numbers<[1], [0], [0], [1], [0, 0, 1, 1], [], []>} : vector<1x128xf32>, vector<128x128xf32>, vector<1x128xf32> -> vector<1x128xf32>
    %cst_51 = arith.constant 9.99999974E-6 : f32
    %88 = vector.broadcast %cst_51 : f32 to vector<1x128xf32>
    %89 = arith.addf %87, %88 : vector<1x128xf32>
    %90 = math.rsqrt %89 : vector<1x128xf32>
    %91 = vector.broadcast %90 : vector<1x128xf32> to vector<16x128xf32>
    %92 = arith.mulf %83, %91 : vector<16x128xf32>
    %cst_52 = arith.constant 0.000000e+00 : f32
    %93 = vector.broadcast %cst_52 : f32 to vector<16x128xf32>
    %94 = arith.maximumf %92, %93 : vector<16x128xf32>
    %cst_53 = arith.constant dense<0.000000e+00> : vector<16x128xf32>
    %95 = tpu.matmul %6, %94, %cst_53 {dimension_numbers = #tpu.dot_dimension_numbers<[1], [0], [0], [1], [0, 0, 1, 1], [], []>} : vector<16x16xf32>, vector<16x128xf32>, vector<16x128xf32> -> vector<16x128xf32>
    %cst_54 = arith.constant dense<0.000000e+00> : vector<16x128xf32>
    %96 = tpu.matmul %11, %94, %cst_54 {dimension_numbers = #tpu.dot_dimension_numbers<[1], [0], [0], [1], [0, 0, 1, 1], [], []>} : vector<16x16xf32>, vector<16x128xf32>, vector<16x128xf32> -> vector<16x128xf32>
    %97 = tpu.concatenate %95, %94, %96 in 1 : vector<16x128xf32>, vector<16x128xf32>, vector<16x128xf32> -> vector<16x384xf32>
    %c1_55 = arith.constant 1 : index
    %c0_56 = arith.constant 0 : index
    %c0_57 = arith.constant 0 : index
    %98 = vector.load %arg4[%c1_55, %c0_56, %c0_57] : memref<2x384x128xf32, #tpu.memory_space<vmem>>, vector<1x384x128xf32>
    %99 = vector.shape_cast %98 : vector<1x384x128xf32> to vector<384x128xf32>
    %cst_58 = arith.constant dense<0.000000e+00> : vector<16x128xf32>
    %100 = tpu.matmul %97, %99, %cst_58 {dimension_numbers = #tpu.dot_dimension_numbers<[1], [0], [0], [1], [0, 0, 1, 1], [], []>} : vector<16x384xf32>, vector<384x128xf32>, vector<16x128xf32> -> vector<16x128xf32>
    %c1_59 = arith.constant 1 : index
    %c0_60 = arith.constant 0 : index
    %c0_61 = arith.constant 0 : index
    %101 = vector.load %arg5[%c1_59, %c0_60, %c0_61] : memref<2x1x128xf32, #tpu.memory_space<vmem>>, vector<1x1x128xf32>
    %102 = vector.shape_cast %101 : vector<1x1x128xf32> to vector<1x128xf32>
    %103 = vector.broadcast %102 : vector<1x128xf32> to vector<16x128xf32>
    %104 = arith.addf %100, %103 : vector<16x128xf32>
    %cst_62 = arith.constant dense<0.000000e+00> : vector<128xf32>
    %105 = vector.multi_reduction <add>, %104, %cst_62 [0] : vector<16x128xf32> to vector<128xf32>
    %106 = vector.shape_cast %105 : vector<128xf32> to vector<1x128xf32>
    %cst_63 = arith.constant dense<0.000000e+00> : vector<1x128xf32>
    %107 = tpu.matmul %106, %12, %cst_63 {dimension_numbers = #tpu.dot_dimension_numbers<[1], [0], [0], [1], [0, 0, 1, 1], [], []>} : vector<1x128xf32>, vector<128x128xf32>, vector<1x128xf32> -> vector<1x128xf32>
    %108 = vector.broadcast %107 : vector<1x128xf32> to vector<16x128xf32>
    %109 = arith.subf %104, %108 : vector<16x128xf32>
    %110 = arith.mulf %109, %109 : vector<16x128xf32>
    %cst_64 = arith.constant dense<0.000000e+00> : vector<128xf32>
    %111 = vector.multi_reduction <add>, %110, %cst_64 [0] : vector<16x128xf32> to vector<128xf32>
    %112 = vector.shape_cast %111 : vector<128xf32> to vector<1x128xf32>
    %cst_65 = arith.constant dense<0.000000e+00> : vector<1x128xf32>
    %113 = tpu.matmul %112, %12, %cst_65 {dimension_numbers = #tpu.dot_dimension_numbers<[1], [0], [0], [1], [0, 0, 1, 1], [], []>} : vector<1x128xf32>, vector<128x128xf32>, vector<1x128xf32> -> vector<1x128xf32>
    %cst_66 = arith.constant 9.99999974E-6 : f32
    %114 = vector.broadcast %cst_66 : f32 to vector<1x128xf32>
    %115 = arith.addf %113, %114 : vector<1x128xf32>
    %116 = math.rsqrt %115 : vector<1x128xf32>
    %117 = vector.broadcast %116 : vector<1x128xf32> to vector<16x128xf32>
    %118 = arith.mulf %109, %117 : vector<16x128xf32>
    %c0_67 = arith.constant 0 : index
    %c0_68 = arith.constant 0 : index
    %119 = vector.load %arg8[%c0_67, %c0_68] : memref<16x128xf32, #tpu.memory_space<vmem>>, vector<16x128xf32>
    %120 = arith.addf %118, %119 : vector<16x128xf32>
    %c0_69 = arith.constant 0 : index
    %c0_70 = arith.constant 0 : index
    %c0_71 = arith.constant 0 : index
    %121 = vector.load %arg7[%c0_69, %c0_70, %c0_71] : memref<1x16x128xf32, #tpu.memory_space<vmem>>, vector<1x16x128xf32>
    %122 = vector.shape_cast %121 : vector<1x16x128xf32> to vector<16x128xf32>
    %123 = vector.shape_cast %120 : vector<16x128xf32> to vector<1x16x128xf32>
    tpu.vector_store %arg7[%c0_69, %c0_70, %c0_71], %123 {strides = array<i32>} : memref<1x16x128xf32, #tpu.memory_space<vmem>>, vector<1x16x128xf32>,
    return
  }
  func.func @transform_0(%arg0: i32) -> (i32, i32, i32) {
    %c0_i32 = arith.constant 0 : i32
    %c0_i32_0 = arith.constant 0 : i32
    %c0_i32_1 = arith.constant 0 : i32
    return %arg0, %c0_i32, %c0_i32_0 : i32, i32, i32
  }
  func.func @transform_1(%arg0: i32) -> (i32, i32, i32) {
    %c0_i32 = arith.constant 0 : i32
    %c0_i32_0 = arith.constant 0 : i32
    %c0_i32_1 = arith.constant 0 : i32
    %c0_i32_2 = arith.constant 0 : i32
    return %c0_i32, %c0_i32_0, %c0_i32_1 : i32, i32, i32
  }
  func.func @transform_2(%arg0: i32) -> (i32, i32, i32) {
    %c0_i32 = arith.constant 0 : i32
    %c0_i32_0 = arith.constant 0 : i32
    %c0_i32_1 = arith.constant 0 : i32
    %c0_i32_2 = arith.constant 0 : i32
    return %c0_i32, %c0_i32_0, %c0_i32_1 : i32, i32, i32
  }
  func.func @transform_3(%arg0: i32) -> (i32, i32, i32) {
    %c0_i32 = arith.constant 0 : i32
    %c0_i32_0 = arith.constant 0 : i32
    %c0_i32_1 = arith.constant 0 : i32
    %c0_i32_2 = arith.constant 0 : i32
    return %c0_i32, %c0_i32_0, %c0_i32_1 : i32, i32, i32
  }
  func.func @transform_4(%arg0: i32) -> (i32, i32, i32) {
    %c0_i32 = arith.constant 0 : i32
    %c0_i32_0 = arith.constant 0 : i32
    %c0_i32_1 = arith.constant 0 : i32
    %c0_i32_2 = arith.constant 0 : i32
    return %c0_i32, %c0_i32_0, %c0_i32_1 : i32, i32, i32
  }
  func.func @transform_5(%arg0: i32) -> (i32, i32) {
    %c0_i32 = arith.constant 0 : i32
    %c0_i32_0 = arith.constant 0 : i32
    %c0_i32_1 = arith.constant 0 : i32
    return %c0_i32, %c0_i32_0 : i32, i32
  }
  func.func @transform_6(%arg0: i32) -> (i32, i32, i32) {
    %c0_i32 = arith.constant 0 : i32
    %c0_i32_0 = arith.constant 0 : i32
    %c0_i32_1 = arith.constant 0 : i32
    return %arg0, %c0_i32, %c0_i32_0 : i32, i32, i32
  }
}

</mosaic_0001>

<llo_original>
// kernel: tpu_custom_call.1
$region0: #{tpu_custom_call.1}
  #allocation0 [shape = 'u32[]', space=smem, size = 0x4, offset = 0x4, fixed_abs, tag = 'smem constant byte address 0x4 - core index']
  #allocation1 [shape = 'u32[144,128]{1,0:T(1,128)}', space=vmem, size = 0x12000, scoped, tag = 'internal scratch']
  #allocation2 [shape = 'f32[16,128]{1,0:T(8,128)}', space=vmem, size = 0x2000, scoped, tag = 'scratch operand']
  %s0 = inlined_call_operand.hbm [shape: f32[2,16,128], index: 0, kind: input, shape index: {}]
  %s1 = inlined_call_operand.hbm [shape: f32[2,384,128], index: 1, kind: input, shape index: {}]
  %s2 = inlined_call_operand.vmem [shape: f32[2,1,128], index: 2, kind: input, shape index: {}]
  %s3 = inlined_call_operand.hbm [shape: f32[2,384,128], index: 3, kind: input, shape index: {}]
  %s4 = inlined_call_operand.vmem [shape: f32[2,1,128], index: 4, kind: input, shape index: {}]
  %s5 = inlined_call_operand.hbm [shape: f32[128,128], index: 5, kind: input, shape index: {}]
  %s6 = inlined_call_operand.hbm [shape: f32[2,16,128], index: 6, kind: output, shape index: {}]
  %s7 = sld [smem:[#allocation0]]
  $region73: #{tpu_custom_call.1} parent=0
    _
  %s9 = ssub.s32 1, %s7
  %s10 = scalar_select 0, %s9, %s7
  $region1: #{tpu_custom_call.1} parent=0
    #allocation3 [shape = 'u8[16384]{0}', space=vmem, size = 0x4000, scoped, tag = 'input window, operand 0']
    #allocation4 [shape = 's32[2]{0}', space=sflag, size = 0x8, scoped, tag = 'scoped memory for tpu_custom_call.1']
    #allocation5 [shape = 's32[2]{0}', space=sflag, size = 0x8, scoped, tag = 'scoped memory for tpu_custom_call.1']
    #allocation6 [shape = 'u8[393216]{0}', space=vmem, size = 0x60000, scoped, tag = 'input window, operand 1, single buffered']
    #allocation7 [shape = 's32[1]{0}', space=sflag, size = 0x4, scoped, tag = 'scoped memory for tpu_custom_call.1']
    #allocation8 [shape = 'u8[393216]{0}', space=vmem, size = 0x60000, scoped, tag = 'input window, operand 3, single buffered']
    #allocation9 [shape = 'u8[65536]{0}', space=vmem, size = 0x10000, scoped, tag = 'input window, operand 5, single buffered']
    #allocation10 [shape = 's32[1]{0}', space=sflag, size = 0x4, scoped, tag = 'scoped memory for tpu_custom_call.1']
    #allocation11 [shape = 'u8[16384]{0}', space=vmem, size = 0x4000, scoped, tag = 'output window, operand 0']
    %11 = vsyncpa [#allocation4], 0
    %s12 = scalar_lea.sflag [#allocation4], 1
    %13 = vsyncpa %s12, 0
    %14 = vsyncpa [#allocation7], 0
    %15 = vsyncpa [#allocation10], 0
    %16 = vsyncpa [#allocation5], 0
    %s17 = scalar_lea.sflag [#allocation5], 1
    %18 = vsyncpa %s17, 0
    loop: start=0, step=1, limit=4
    $region2: #{tpu_custom_call.1} parent=1 // loop_pre_header
      _
    $region3: #{tpu_custom_call.1} parent=1 // loop_header
      %s20 = sphi 0, %s24
      %p21 = scmp.ge.s32.totalorder %s20, 4
      %s30 = sphi 0, %s32
      %s33 = sphi 0, %s30
      %s34 = sphi 0, %s33
      %s50 = sphi 0, %s34
      %s54 = sphi 0, %s54
      %s56 = sphi 0, %s54
      %s57 = sphi 0, %s56
      %s71 = sphi 0, %s57
      %s75 = sphi 0, %s75
      %s77 = sphi 0, %s75
      %s78 = sphi 0, %s77
      %s92 = sphi 0, %s78
      %s96 = sphi 0, %s96
      %s98 = sphi 0, %s96
      %s99 = sphi 0, %s98
      %s113 = sphi 0, %s99
      %s117 = sphi 0, %s117
      %s119 = sphi 0, %s117
      %s120 = sphi 0, %s119
      %s134 = sphi 0, %s120
      %s138 = sphi 0, %s138
      %s140 = sphi 0, %s138
      %s141 = sphi 0, %s140
      %s155 = sphi 0, %s141
      %s161 = sphi 0, %s163
      %s164 = sphi 0, %s161
      %s165 = sphi 0, %s164
      %s181 = sphi 0, %s165
    $region4: #{tpu_custom_call.1} parent=1 // loop_header_branch
      %23 = sbr.rel (%p21) target = $region8
    $region5: #{tpu_custom_call.1} parent=1 // loop_body
      %s25 = ssub.s32 %s20, 1
      %s26 = ssub.s32 %s20, 2
      %s27 = sadd.s32 %s20, 1
      %s28 = ssub.s32 %s20, %s27
      %p29 = scmp.eq.s32.totalorder %s28, 0
      %s31 = sadd.s32 %s30, 1
      %s32 = scalar_select %p29, %s30, %s31
      %p35 = pneg %p29
      %p36 = scmp.eq.s32.totalorder %s20, 1
      %p37 = por %p35, %p36
      %p38 = scmp.ne.s32.totalorder %s30, %s33
      %p39 = scmp.eq.s32.totalorder %s20, 0
      %p40 = por %p38, %p39
      %p41 = scmp.ne.s32.totalorder %s30, %s33
      %p42 = scmp.eq.s32.totalorder %s25, 1
      %p43 = por %p41, %p42
      %p44 = scmp.ne.s32.totalorder %s33, %s34
      %p45 = scmp.eq.s32.totalorder %s25, 0
      %p46 = por %p44, %p45
      %p47 = scmp.ne.s32.totalorder %s33, %s34
      %p48 = scmp.eq.s32.totalorder %s26, 1
      %p49 = por %p47, %p48
      %p51 = scmp.ne.s32.totalorder %s34, %s50
      %p52 = scmp.eq.s32.totalorder %s26, 0
      %p53 = por %p51, %p52
      %s55 = sadd.s32 %s54, 1
      %p58 = scmp.eq.s32.totalorder %s20, 1
      %p59 = scmp.ne.s32.totalorder %s54, %s56
      %p60 = scmp.eq.s32.totalorder %s20, 0
      %p61 = por %p59, %p60
      %p62 = scmp.ne.s32.totalorder %s54, %s56
      %p63 = scmp.eq.s32.totalorder %s25, 1
      %p64 = por %p62, %p63
      %p65 = scmp.ne.s32.totalorder %s56, %s57
      %p66 = scmp.eq.s32.totalorder %s25, 0
      %p67 = por %p65, %p66
      %p68 = scmp.ne.s32.totalorder %s56, %s57
      %p69 = scmp.eq.s32.totalorder %s26, 1
      %p70 = por %p68, %p69
      %p72 = scmp.ne.s32.totalorder %s57, %s71
      %p73 = scmp.eq.s32.totalorder %s26, 0
      %p74 = por %p72, %p73
      %s76 = sadd.s32 %s75, 1
      %p79 = scmp.eq.s32.totalorder %s20, 1
      %p80 = scmp.ne.s32.totalorder %s75, %s77
      %p81 = scmp.eq.s32.totalorder %s20, 0
      %p82 = por %p80, %p81
      %p83 = scmp.ne.s32.totalorder %s75, %s77
      %p84 = scmp.eq.s32.totalorder %s25, 1
      %p85 = por %p83, %p84
      %p86 = scmp.ne.s32.totalorder %s77, %s78
      %p87 = scmp.eq.s32.totalorder %s25, 0
      %p88 = por %p86, %p87
      %p89 = scmp.ne.s32.totalorder %s77, %s78
      %p90 = scmp.eq.s32.totalorder %s26, 1
      %p91 = por %p89, %p90
      %p93 = scmp.ne.s32.totalorder %s78, %s92
      %p94 = scmp.eq.s32.totalorder %s26, 0
      %p95 = por %p93, %p94
      %s97 = sadd.s32 %s96, 1
      %p100 = scmp.eq.s32.totalorder %s20, 1
      %p101 = scmp.ne.s32.totalorder %s96, %s98
      %p102 = scmp.eq.s32.totalorder %s20, 0
      %p103 = por %p101, %p102
      %p104 = scmp.ne.s32.totalorder %s96, %s98
      %p105 = scmp.eq.s32.totalorder %s25, 1
      %p106 = por %p104, %p105
      %p107 = scmp.ne.s32.totalorder %s98, %s99
      %p108 = scmp.eq.s32.totalorder %s25, 0
      %p109 = por %p107, %p108
      %p110 = scmp.ne.s32.totalorder %s98, %s99
      %p111 = scmp.eq.s32.totalorder %s26, 1
      %p112 = por %p110, %p111
      %p114 = scmp.ne.s32.totalorder %s99, %s113
      %p115 = scmp.eq.s32.totalorder %s26, 0
      %p116 = por %p114, %p115
      %s118 = sadd.s32 %s117, 1
      %p121 = scmp.eq.s32.totalorder %s20, 1
      %p122 = scmp.ne.s32.totalorder %s117, %s119
      %p123 = scmp.eq.s32.totalorder %s20, 0
      %p124 = por %p122, %p123
      %p125 = scmp.ne.s32.totalorder %s117, %s119
      %p126 = scmp.eq.s32.totalorder %s25, 1
      %p127 = por %p125, %p126
      %p128 = scmp.ne.s32.totalorder %s119, %s120
      %p129 = scmp.eq.s32.totalorder %s25, 0
      %p130 = por %p128, %p129
      %p131 = scmp.ne.s32.totalorder %s119, %s120
      %p132 = scmp.eq.s32.totalorder %s26, 1
      %p133 = por %p131, %p132
      %p135 = scmp.ne.s32.totalorder %s120, %s134
      %p136 = scmp.eq.s32.totalorder %s26, 0
      %p137 = por %p135, %p136
      %s139 = sadd.s32 %s138, 1
      %p142 = scmp.eq.s32.totalorder %s20, 1
      %p143 = scmp.ne.s32.totalorder %s138, %s140
      %p144 = scmp.eq.s32.totalorder %s20, 0
      %p145 = por %p143, %p144
      %p146 = scmp.ne.s32.totalorder %s138, %s140
      %p147 = scmp.eq.s32.totalorder %s25, 1
      %p148 = por %p146, %p147
      %p149 = scmp.ne.s32.totalorder %s140, %s141
      %p150 = scmp.eq.s32.totalorder %s25, 0
      %p151 = por %p149, %p150
      %p152 = scmp.ne.s32.totalorder %s140, %s141
      %p153 = scmp.eq.s32.totalorder %s26, 1
      %p154 = por %p152, %p153
      %p156 = scmp.ne.s32.totalorder %s141, %s155
      %p157 = scmp.eq.s32.totalorder %s26, 0
      %p158 = por %p156, %p157
      %s159 = ssub.s32 %s20, %s27
      %p160 = scmp.eq.s32.totalorder %s159, 0
      %s162 = sadd.s32 %s161, 1
      %s163 = scalar_select %p160, %s161, %s162
      %p166 = pneg %p160
      %p167 = scmp.eq.s32.totalorder %s20, 1
      %p168 = por %p166, %p167
      %p169 = scmp.ne.s32.totalorder %s161, %s164
      %p170 = scmp.eq.s32.totalorder %s20, 0
      %p171 = por %p169, %p170
      %p172 = scmp.ne.s32.totalorder %s161, %s164
      %p173 = scmp.eq.s32.totalorder %s25, 1
      %p174 = por %p172, %p173
      %p175 = scmp.ne.s32.totalorder %s164, %s165
      %p176 = scmp.eq.s32.totalorder %s25, 0
      %p177 = por %p175, %p176
      %p178 = scmp.ne.s32.totalorder %s164, %s165
      %p179 = scmp.eq.s32.totalorder %s26, 1
      %p180 = por %p178, %p179
      %p182 = scmp.ne.s32.totalorder %s165, %s181
      %p183 = scmp.eq.s32.totalorder %s26, 0
      %p184 = por %p182, %p183
      %p185 = scmp.le.s32.totalorder 1, %s20
      %p186 = scmp.lt.s32.totalorder %s20, 3
      %p187 = pnand %p185, %p186
      %p188 = pneg %p187
      // Predicated region
      $region9: #{tpu_custom_call.1} parent=5 // pred_check
        _
      $region10: #{tpu_custom_call.1} parent=5 // pred_check_branch
        %190 = sbr.rel (%p187) target = $region12
      $region11: #{tpu_custom_call.1} parent=5 // pred_region
        %s191 = ssub.s32 %s20, 1
        // Predicated region
        $region13: #{tpu_custom_call.1} parent=11 // pred_check
          %p192 = pneg %p67
        $region14: #{tpu_custom_call.1} parent=11 // pred_check_branch
          %194 = sbr.rel (%p192) target = $region16
        $region15: #{tpu_custom_call.1} parent=11 // pred_region
          %s196 = ssub.s32 12288, 12288
          %197 = vsyncadd [#allocation7], %s196
          %s198 = sshll.u32 [#allocation6], 4
          %s199 = int_to_ptr.vmem [resolvable:$true] %s198
          %204 = dma.hbm_to_vmem [thread:$0]  %s1, 12288, %s199, [#allocation7], 128, 128, 8
        $region16: #{tpu_custom_call.1} parent=11 // pred_fallthru
          _
        // Predicated region
        $region17: #{tpu_custom_call.1} parent=11 // pred_check
          %p205 = pneg %p88
        $region18: #{tpu_custom_call.1} parent=11 // pred_check_branch
          %207 = sbr.rel (%p205) target = $region20
        $region19: #{tpu_custom_call.1} parent=11 // pred_region
          _
        $region20: #{tpu_custom_call.1} parent=11 // pred_fallthru
          _
        // Predicated region
        $region21: #{tpu_custom_call.1} parent=11 // pred_check
          %p208 = pneg %p109
        $region22: #{tpu_custom_call.1} parent=11 // pred_check_branch
          %210 = sbr.rel (%p208) target = $region24
        $region23: #{tpu_custom_call.1} parent=11 // pred_region
          %s212 = ssub.s32 12288, 12288
          %213 = vsyncadd [#allocation7], %s212
          %s214 = sshll.u32 [#allocation8], 4
          %s215 = int_to_ptr.vmem [resolvable:$true] %s214
          %220 = dma.hbm_to_vmem [thread:$0]  %s3, 12288, %s215, [#allocation7], 128, 128, 8
        $region24: #{tpu_custom_call.1} parent=11 // pred_fallthru
          _
        // Predicated region
        $region25: #{tpu_custom_call.1} parent=11 // pred_check
          %p221 = pneg %p130
        $region26: #{tpu_custom_call.1} parent=11 // pred_check_branch
          %223 = sbr.rel (%p221) target = $region28
        $region27: #{tpu_custom_call.1} parent=11 // pred_region
          _
        $region28: #{tpu_custom_call.1} parent=11 // pred_fallthru
          _
        // Predicated region
        $region29: #{tpu_custom_call.1} parent=11 // pred_check
          %p224 = pneg %p151
        $region30: #{tpu_custom_call.1} parent=11 // pred_check_branch
          %226 = sbr.rel (%p224) target = $region32
        $region31: #{tpu_custom_call.1} parent=11 // pred_region
          %s228 = ssub.s32 2048, 2048
          %229 = vsyncadd [#allocation10], %s228
          %s230 = sshll.u32 [#allocation9], 4
          %s231 = int_to_ptr.vmem [resolvable:$true] %s230
          %236 = dma.hbm_to_vmem [thread:$0]  %s5, 2048, %s231, [#allocation10], 128, 128, 8
        $region32: #{tpu_custom_call.1} parent=11 // pred_fallthru
          _
      $region12: #{tpu_custom_call.1} parent=5 // pred_fallthru
        _
      %p237 = scmp.lt.s32.totalorder %s20, 2
      // Predicated region
      $region33: #{tpu_custom_call.1} parent=5 // pred_check
        %p238 = pneg %p237
      $region34: #{tpu_custom_call.1} parent=5 // pred_check_branch
        %240 = sbr.rel (%p238) target = $region36
      $region35: #{tpu_custom_call.1} parent=5 // pred_region
        // Predicated region
        $region37: #{tpu_custom_call.1} parent=35 // pred_check
          %p241 = pneg %p40
        $region38: #{tpu_custom_call.1} parent=35 // pred_check_branch
          %243 = sbr.rel (%p241) target = $region40
        $region39: #{tpu_custom_call.1} parent=35 // pred_region
          %s244 = sand.u32 %s30, 1
          %s245 = scalar_lea.sflag [#allocation4], %s244
          %s246 = sand.u32 %s30, 1
          %s247 = smul.addr %s246, 16
          %s248 = scalar_lea.vmem [#allocation3], %s247
          %s250 = ssub.s32 256, 256
          %251 = vsyncadd %s245, %s250
          %s252 = smul.addr %s20, 2
          %s253 = smul.addr %s252, 128
          %s254 = scalar_lea.hbm %s0, %s253
          %s255 = sshll.u32 %s248, 4
          %s256 = int_to_ptr.vmem [resolvable:$true] %s255
          %261 = dma.hbm_to_vmem [thread:$0]  %s254, 256, %s256, %s245, 128, 128, 8
        $region40: #{tpu_custom_call.1} parent=35 // pred_fallthru
          _
      $region36: #{tpu_custom_call.1} parent=5 // pred_fallthru
        _
      %p262 = scmp.le.s32.totalorder 1, %s20
      %p263 = scmp.lt.s32.totalorder %s20, 3
      %p264 = pnand %p262, %p263
      %p265 = pneg %p264
      // Predicated region
      $region41: #{tpu_custom_call.1} parent=5 // pred_check
        _
      $region42: #{tpu_custom_call.1} parent=5 // pred_check_branch
        %267 = sbr.rel (%p264) target = $region44
      $region43: #{tpu_custom_call.1} parent=5 // pred_region
        %s268 = ssub.s32 %s20, 1
        %s269 = sand.u32 %s33, 1
        %s270 = scalar_lea.sflag [#allocation4], %s269
        %s271 = sand.u32 %s33, 1
        %s272 = smul.addr %s271, 16
        %s273 = scalar_lea.vmem [#allocation3], %s272
        // Predicated region
        $region45: #{tpu_custom_call.1} parent=43 // pred_check
          %p274 = pneg %p46
        $region46: #{tpu_custom_call.1} parent=43 // pred_check_branch
          %276 = sbr.rel (%p274) target = $region48
        $region47: #{tpu_custom_call.1} parent=43 // pred_region
          %277 = dma.done %s270, 256
        $region48: #{tpu_custom_call.1} parent=43 // pred_fallthru
          _
        // Predicated region
        $region49: #{tpu_custom_call.1} parent=43 // pred_check
          %p278 = pneg %p67
        $region50: #{tpu_custom_call.1} parent=43 // pred_check_branch
          %280 = sbr.rel (%p278) target = $region52
        $region51: #{tpu_custom_call.1} parent=43 // pred_region
          %281 = dma.done [#allocation7], 12288
        $region52: #{tpu_custom_call.1} parent=43 // pred_fallthru
          _
        // Predicated region
        $region53: #{tpu_custom_call.1} parent=43 // pred_check
          %p282 = pneg %p109
        $region54: #{tpu_custom_call.1} parent=43 // pred_check_branch
          %284 = sbr.rel (%p282) target = $region56
        $region55: #{tpu_custom_call.1} parent=43 // pred_region
          %285 = dma.done [#allocation7], 12288
        $region56: #{tpu_custom_call.1} parent=43 // pred_fallthru
          _
        // Predicated region
        $region57: #{tpu_custom_call.1} parent=43 // pred_check
          %p286 = pneg %p151
        $region58: #{tpu_custom_call.1} parent=43 // pred_check_branch
          %288 = sbr.rel (%p286) target = $region60
        $region59: #{tpu_custom_call.1} parent=43 // pred_region
          %289 = dma.done [#allocation10], 2048
        $region60: #{tpu_custom_call.1} parent=43 // pred_fallthru
          _
        %s290 = sand.u32 %s33, 1
        %s291 = scalar_lea.sflag [#allocation4], %s290
        %s292 = sand.u32 %s33, 1
        %s293 = smul.addr %s292, 16
        %s294 = scalar_lea.vmem [#allocation3], %s293
        %p295 = pneg %p46
        %p296 = pneg %p43
        %p297 = pneg %p67
        %p298 = pneg %p64
        %p299 = pneg %p88
        %p300 = pneg %p85
        %p301 = pneg %p109
        %p302 = pneg %p106
        %p303 = pneg %p130
        %p304 = pneg %p127
        %p305 = pneg %p151
        %p306 = pneg %p148
        %p307 = pneg %p177
        %p308 = pneg %p174
        %s309 = sand.u32 %s164, 1
        %s310 = scalar_lea.sflag [#allocation5], %s309
        %s311 = sand.u32 %s164, 1
        %s312 = smul.addr %s311, 16
        %s313 = scalar_lea.vmem [#allocation11], %s312
        %v314 = vlaneseq
        %v315 = vshrl.u32 %v314, 7
        %v316 = vadd.s32 %v315, 8
        %v317 = vlaneseq
        %v318 = vand.u32 %v317, 127
        %v319 = vsub.s32 %v315, 1
        %v320 = vsub.s32 %v316, 1
        %vm321 = vcmp.eq.s32.totalorder %v318, %v319
        %vm322 = vcmp.eq.s32.totalorder %v318, %v320
        %v323 = vsel %vm321, 1, 0
        %v324 = vsel %vm322, 1, 0
        %v325 = vcvt.s32.f32 %v323
        %v326 = vcvt.s32.f32 %v324
        %v327 = vadd.s32 %v315, 1
        %v328 = vadd.s32 %v316, 1
        %vm329 = vcmp.eq.s32.totalorder %v318, %v327
        %vm330 = vcmp.eq.s32.totalorder %v318, %v328
        %v331 = vsel %vm329, 1, 0
        %v332 = vsel %vm330, 1, 0
        %v333 = vcvt.s32.f32 %v331
        %v334 = vcvt.s32.f32 %v332
        %v335 = vld [vmem:[#allocation9] sm:$0xff]
        %v336 = vld [vmem:[#allocation9 + $0x8] sm:$0xff]
        %v337 = vld [vmem:[#allocation9 + $0x10] sm:$0xff]
        %v338 = vld [vmem:[#allocation9 + $0x18] sm:$0xff]
        %v339 = vld [vmem:[#allocation9 + $0x20] sm:$0xff]
        %v340 = vld [vmem:[#allocation9 + $0x28] sm:$0xff]
        %v341 = vld [vmem:[#allocation9 + $0x30] sm:$0xff]
        %v342 = vld [vmem:[#allocation9 + $0x38] sm:$0xff]
        %v343 = vld [vmem:[#allocation9 + $0x40] sm:$0xff]
        %v344 = vld [vmem:[#allocation9 + $0x48] sm:$0xff]
        %v345 = vld [vmem:[#allocation9 + $0x50] sm:$0xff]
        %v346 = vld [vmem:[#allocation9 + $0x58] sm:$0xff]
        %v347 = vld [vmem:[#allocation9 + $0x60] sm:$0xff]
        %v348 = vld [vmem:[#allocation9 + $0x68] sm:$0xff]
        %v349 = vld [vmem:[#allocation9 + $0x70] sm:$0xff]
        %v350 = vld [vmem:[#allocation9 + $0x78] sm:$0xff]
        %v351 = vld [vmem:[%s273] sm:$0xff]
        %v352 = vld [vmem:[%s273 + $0x8] sm:$0xff]
        %353 = vst [vmem:[#allocation2] sm:$0xff] %v351
        %354 = vst [vmem:[#allocation2 + $0x8] sm:$0xff] %v352
        %vm355 = vcmask 130048
        %v357 = vsel %vm355, %v325, 0
        %v360 = vsel %vm355, %v326, 0
        %362 = vmatprep.subr.mxu0 0.0
        %363 = vmatpush1.msra.mxu0 %v351
        %364 = vmatprep.subr.mxu0 0.0
        %365 = vmatpush1.msra.mxu0 %v352
        %366 = vmatprep.subr.mxu0 0.0
        %367 = vmatpush1.msra.mxu0 0.0
        %368 = vmatprep.subr.mxu0 0.0
        %369 = vmatpush1.msra.mxu0 0.0
        %370 = vmatprep.subr.mxu0 0.0
        %371 = vmatpush1.msra.mxu0 0.0
        %372 = vmatprep.subr.mxu0 0.0
        %373 = vmatpush1.msra.mxu0 0.0
        %374 = vmatprep.subr.mxu0 0.0
        %375 = vmatpush1.msra.mxu0 0.0
        %376 = vmatprep.subr.mxu0 0.0
        %377 = vmatpush1.msra.mxu0 0.0
        %378 = vmatprep.subr.mxu0 0.0
        %379 = vmatpush1.msra.mxu0 0.0
        %380 = vmatprep.subr.mxu0 0.0
        %381 = vmatpush1.msra.mxu0 0.0
        %382 = vmatprep.subr.mxu0 0.0
        %383 = vmatpush1.msra.mxu0 0.0
        %384 = vmatprep.subr.mxu0 0.0
        %385 = vmatpush1.msra.mxu0 0.0
        %386 = vmatprep.subr.mxu0 0.0
        %387 = vmatpush1.msra.mxu0 0.0
        %388 = vmatprep.subr.mxu0 0.0
        %389 = vmatpush1.msra.mxu0 0.0
        %390 = vmatprep.subr.mxu0 0.0
        %391 = vmatpush1.msra.mxu0 0.0
        %392 = vmatprep.subr.mxu0 0.0
        %393 = vmatpush1.msra.mxu0 0.0
        %394 = vmatprep.subr.mxu0 0.0
        %395 = vmatpush1.msra.mxu0 0.0
        %396 = vmatprep.subr.mxu0 0.0
        %397 = vmatpush1.msra.mxu0 0.0
        %398 = vmatprep.subr.mxu0 0.0
        %399 = vmatpush1.msra.mxu0 0.0
        %400 = vmatprep.subr.mxu0 0.0
        %401 = vmatpush1.msra.mxu0 0.0
        %402 = vmatprep.subr.mxu0 0.0
        %403 = vmatpush1.msra.mxu0 0.0
        %404 = vmatprep.subr.mxu0 0.0
        %405 = vmatpush1.msra.mxu0 0.0
        %406 = vmatprep.subr.mxu0 0.0
        %407 = vmatpush1.msra.mxu0 0.0
        %408 = vmatprep.subr.mxu0 0.0
        %409 = vmatpush1.msra.mxu0 0.0
        %410 = vmatprep.subr.mxu0 0.0
        %411 = vmatpush1.msra.mxu0 0.0
        %412 = vmatprep.subr.mxu0 0.0
        %413 = vmatpush1.msra.mxu0 0.0
        %414 = vmatprep.subr.mxu0 0.0
        %415 = vmatpush1.msra.mxu0 0.0
        %416 = vmatprep.subr.mxu0 0.0
        %417 = vmatpush1.msra.mxu0 0.0
        %418 = vmatprep.subr.mxu0 0.0
        %419 = vmatpush1.msra.mxu0 0.0
        %420 = vmatprep.subr.mxu0 0.0
        %421 = vmatpush1.msra.mxu0 0.0
        %422 = vmatprep.subr.mxu0 0.0
        %423 = vmatpush1.msra.mxu0 0.0
        %424 = vmatprep.subr.mxu0 0.0
        %425 = vmatpush1.msra.mxu0 0.0
        %426 = vmatprep.mubr.f32.mxu0 0.0
        %427 = vmatmul.mubr.f32.gmra.mrb[0].mxu0 %v357
        %v428 = vpop.f32.mrb[0].mxu0
        %v429 = vadd.f32 0.0, %v428
        %v430 = vpop.f32.mrb[0].mxu0
        %431 = vmatprep.mubr.f32.mxu0 0.0
        %432 = vmatmul.mubr.f32.gmra.mrb[0].mxu0 %v360
        %v433 = vpop.f32.mrb[0].mxu0
        %v434 = vadd.f32 0.0, %v433
        %v435 = vpop.f32.mrb[0].mxu0
        %436 = vdwg.mxu0
        %v438 = vsel %vm355, %v333, 0
        %v441 = vsel %vm355, %v334, 0
        %443 = vmatprep.subr.mxu0 0.0
        %444 = vmatpush1.msra.mxu0 %v351
        %445 = vmatprep.subr.mxu0 0.0
        %446 = vmatpush1.msra.mxu0 %v352
        %447 = vmatprep.subr.mxu0 0.0
        %448 = vmatpush1.msra.mxu0 0.0
        %449 = vmatprep.subr.mxu0 0.0
        %450 = vmatpush1.msra.mxu0 0.0
        %451 = vmatprep.subr.mxu0 0.0
        %452 = vmatpush1.msra.mxu0 0.0
        %453 = vmatprep.subr.mxu0 0.0
        %454 = vmatpush1.msra.mxu0 0.0
        %455 = vmatprep.subr.mxu0 0.0
        %456 = vmatpush1.msra.mxu0 0.0
        %457 = vmatprep.subr.mxu0 0.0
        %458 = vmatpush1.msra.mxu0 0.0
        %459 = vmatprep.subr.mxu0 0.0
        %460 = vmatpush1.msra.mxu0 0.0
        %461 = vmatprep.subr.mxu0 0.0
        %462 = vmatpush1.msra.mxu0 0.0
        %463 = vmatprep.subr.mxu0 0.0
        %464 = vmatpush1.msra.mxu0 0.0
        %465 = vmatprep.subr.mxu0 0.0
        %466 = vmatpush1.msra.mxu0 0.0
        %467 = vmatprep.subr.mxu0 0.0
        %468 = vmatpush1.msra.mxu0 0.0
        %469 = vmatprep.subr.mxu0 0.0
        %470 = vmatpush1.msra.mxu0 0.0
        %471 = vmatprep.subr.mxu0 0.0
        %472 = vmatpush1.msra.mxu0 0.0
        %473 = vmatprep.subr.mxu0 0.0
        %474 = vmatpush1.msra.mxu0 0.0
        %475 = vmatprep.subr.mxu0 0.0
        %476 = vmatpush1.msra.mxu0 0.0
        %477 = vmatprep.subr.mxu0 0.0
        %478 = vmatpush1.msra.mxu0 0.0
        %479 = vmatprep.subr.mxu0 0.0
        %480 = vmatpush1.msra.mxu0 0.0
        %481 = vmatprep.subr.mxu0 0.0
        %482 = vmatpush1.msra.mxu0 0.0
        %483 = vmatprep.subr.mxu0 0.0
        %484 = vmatpush1.msra.mxu0 0.0
        %485 = vmatprep.subr.mxu0 0.0
        %486 = vmatpush1.msra.mxu0 0.0
        %487 = vmatprep.subr.mxu0 0.0
        %488 = vmatpush1.msra.mxu0 0.0
        %489 = vmatprep.subr.mxu0 0.0
        %490 = vmatpush1.msra.mxu0 0.0
        %491 = vmatprep.subr.mxu0 0.0
        %492 = vmatpush1.msra.mxu0 0.0
        %493 = vmatprep.subr.mxu0 0.0
        %494 = vmatpush1.msra.mxu0 0.0
        %495 = vmatprep.subr.mxu0 0.0
        %496 = vmatpush1.msra.mxu0 0.0
        %497 = vmatprep.subr.mxu0 0.0
        %498 = vmatpush1.msra.mxu0 0.0
        %499 = vmatprep.subr.mxu0 0.0
        %500 = vmatpush1.msra.mxu0 0.0
        %501 = vmatprep.subr.mxu0 0.0
        %502 = vmatpush1.msra.mxu0 0.0
        %503 = vmatprep.subr.mxu0 0.0
        %504 = vmatpush1.msra.mxu0 0.0
        %505 = vmatprep.subr.mxu0 0.0
        %506 = vmatpush1.msra.mxu0 0.0
        %507 = vmatprep.mubr.f32.mxu0 0.0
        %508 = vmatmul.mubr.f32.gmra.mrb[0].mxu0 %v438
        %v509 = vpop.f32.mrb[0].mxu0
        %v510 = vadd.f32 0.0, %v509
        %v511 = vpop.f32.mrb[0].mxu0
        %512 = vmatprep.mubr.f32.mxu0 0.0
        %513 = vmatmul.mubr.f32.gmra.mrb[0].mxu0 %v441
        %v514 = vpop.f32.mrb[0].mxu0
        %v515 = vadd.f32 0.0, %v514
        %v516 = vpop.f32.mrb[0].mxu0
        %517 = vdwg.mxu0
        %v518 = vld [vmem:[#allocation6] sm:$0xff]
        %v519 = vld [vmem:[#allocation6 + $0x8] sm:$0xff]
        %v520 = vld [vmem:[#allocation6 + $0x10] sm:$0xff]
        %v521 = vld [vmem:[#allocation6 + $0x18] sm:$0xff]
        %v522 = vld [vmem:[#allocation6 + $0x20] sm:$0xff]
        %v523 = vld [vmem:[#allocation6 + $0x28] sm:$0xff]
        %v524 = vld [vmem:[#allocation6 + $0x30] sm:$0xff]
        %v525 = vld [vmem:[#allocation6 + $0x38] sm:$0xff]
        %v526 = vld [vmem:[#allocation6 + $0x40] sm:$0xff]
        %v527 = vld [vmem:[#allocation6 + $0x48] sm:$0xff]
        %v528 = vld [vmem:[#allocation6 + $0x50] sm:$0xff]
        %v529 = vld [vmem:[#allocation6 + $0x58] sm:$0xff]
        %v530 = vld [vmem:[#allocation6 + $0x60] sm:$0xff]
        %v531 = vld [vmem:[#allocation6 + $0x68] sm:$0xff]
        %v532 = vld [vmem:[#allocation6 + $0x70] sm:$0xff]
        %v533 = vld [vmem:[#allocation6 + $0x78] sm:$0xff]
        %v534 = vld [vmem:[#allocation6 + $0x80] sm:$0xff]
        %v535 = vld [vmem:[#allocation6 + $0x88] sm:$0xff]
        %v536 = vld [vmem:[#allocation6 + $0x90] sm:$0xff]
        %v537 = vld [vmem:[#allocation6 + $0x98] sm:$0xff]
        %v538 = vld [vmem:[#allocation6 + $0xa0] sm:$0xff]
        %v539 = vld [vmem:[#allocation6 + $0xa8] sm:$0xff]
        %v540 = vld [vmem:[#allocation6 + $0xb0] sm:$0xff]
        %v541 = vld [vmem:[#allocation6 + $0xb8] sm:$0xff]
        %v542 = vld [vmem:[#allocation6 + $0xc0] sm:$0xff]
        %v543 = vld [vmem:[#allocation6 + $0xc8] sm:$0xff]
        %v544 = vld [vmem:[#allocation6 + $0xd0] sm:$0xff]
        %v545 = vld [vmem:[#allocation6 + $0xd8] sm:$0xff]
        %v546 = vld [vmem:[#allocation6 + $0xe0] sm:$0xff]
        %v547 = vld [vmem:[#allocation6 + $0xe8] sm:$0xff]
        %v548 = vld [vmem:[#allocation6 + $0xf0] sm:$0xff]
        %v549 = vld [vmem:[#allocation6 + $0xf8] sm:$0xff]
        %v550 = vld [vmem:[#allocation6 + $0x100] sm:$0xff]
        %v551 = vld [vmem:[#allocation6 + $0x108] sm:$0xff]
        %v552 = vld [vmem:[#allocation6 + $0x110] sm:$0xff]
        %v553 = vld [vmem:[#allocation6 + $0x118] sm:$0xff]
        %v554 = vld [vmem:[#allocation6 + $0x120] sm:$0xff]
        %v555 = vld [vmem:[#allocation6 + $0x128] sm:$0xff]
        %v556 = vld [vmem:[#allocation6 + $0x130] sm:$0xff]
        %v557 = vld [vmem:[#allocation6 + $0x138] sm:$0xff]
        %v558 = vld [vmem:[#allocation6 + $0x140] sm:$0xff]
        %v559 = vld [vmem:[#allocation6 + $0x148] sm:$0xff]
        %v560 = vld [vmem:[#allocation6 + $0x150] sm:$0xff]
        %v561 = vld [vmem:[#allocation6 + $0x158] sm:$0xff]
        %v562 = vld [vmem:[#allocation6 + $0x160] sm:$0xff]
        %v563 = vld [vmem:[#allocation6 + $0x168] sm:$0xff]
        %v564 = vld [vmem:[#allocation6 + $0x170] sm:$0xff]
        %v565 = vld [vmem:[#allocation6 + $0x178] sm:$0xff]
        %v566 = vld [vmem:[%s2] sm:$0x1]
        %v568 = vlaneseq
        %v569 = vshrl.u32 %v568, 7
        %v570 = vsub.s32 0, %v569
        %v571 = vrot.slane %v566, %v570
        %573 = vmatprep.subr.mxu0 0.0
        %574 = vmatpush1.msra.mxu0 %v518
        %575 = vmatprep.subr.mxu0 0.0
        %576 = vmatpush1.msra.mxu0 %v519
        %577 = vmatprep.subr.mxu0 0.0
        %578 = vmatpush1.msra.mxu0 %v520
        %579 = vmatprep.subr.mxu0 0.0
        %580 = vmatpush1.msra.mxu0 %v521
        %581 = vmatprep.subr.mxu0 0.0
        %582 = vmatpush1.msra.mxu0 %v522
        %583 = vmatprep.subr.mxu0 0.0
        %584 = vmatpush1.msra.mxu0 %v523
        %585 = vmatprep.subr.mxu0 0.0
        %586 = vmatpush1.msra.mxu0 %v524
        %587 = vmatprep.subr.mxu0 0.0
        %588 = vmatpush1.msra.mxu0 %v525
        %589 = vmatprep.subr.mxu0 0.0
        %590 = vmatpush1.msra.mxu0 %v526
        %591 = vmatprep.subr.mxu0 0.0
        %592 = vmatpush1.msra.mxu0 %v527
        %593 = vmatprep.subr.mxu0 0.0
        %594 = vmatpush1.msra.mxu0 %v528
        %595 = vmatprep.subr.mxu0 0.0
        %596 = vmatpush1.msra.mxu0 %v529
        %597 = vmatprep.subr.mxu0 0.0
        %598 = vmatpush1.msra.mxu0 %v530
        %599 = vmatprep.subr.mxu0 0.0
        %600 = vmatpush1.msra.mxu0 %v531
        %601 = vmatprep.subr.mxu0 0.0
        %602 = vmatpush1.msra.mxu0 %v532
        %603 = vmatprep.subr.mxu0 0.0
        %604 = vmatpush1.msra.mxu0 %v533
        %605 = vmatprep.subr.mxu0 0.0
        %606 = vmatpush1.msra.mxu0 %v534
        %607 = vmatprep.subr.mxu0 0.0
        %608 = vmatpush1.msra.mxu0 %v535
        %609 = vmatprep.subr.mxu0 0.0
        %610 = vmatpush1.msra.mxu0 %v536
        %611 = vmatprep.subr.mxu0 0.0
        %612 = vmatpush1.msra.mxu0 %v537
        %613 = vmatprep.subr.mxu0 0.0
        %614 = vmatpush1.msra.mxu0 %v538
        %615 = vmatprep.subr.mxu0 0.0
        %616 = vmatpush1.msra.mxu0 %v539
        %617 = vmatprep.subr.mxu0 0.0
        %618 = vmatpush1.msra.mxu0 %v540
        %619 = vmatprep.subr.mxu0 0.0
        %620 = vmatpush1.msra.mxu0 %v541
        %621 = vmatprep.subr.mxu0 0.0
        %622 = vmatpush1.msra.mxu0 %v542
        %623 = vmatprep.subr.mxu0 0.0
        %624 = vmatpush1.msra.mxu0 %v543
        %625 = vmatprep.subr.mxu0 0.0
        %626 = vmatpush1.msra.mxu0 %v544
        %627 = vmatprep.subr.mxu0 0.0
        %628 = vmatpush1.msra.mxu0 %v545
        %629 = vmatprep.subr.mxu0 0.0
        %630 = vmatpush1.msra.mxu0 %v546
        %631 = vmatprep.subr.mxu0 0.0
        %632 = vmatpush1.msra.mxu0 %v547
        %633 = vmatprep.subr.mxu0 0.0
        %634 = vmatpush1.msra.mxu0 %v548
        %635 = vmatprep.subr.mxu0 0.0
        %636 = vmatpush1.msra.mxu0 %v549
        %637 = vmatprep.mubr.f32.mxu0 %v351
        %638 = vmatmul.mubr.f32.gmra.mrb[0].mxu0 %v429
        %v639 = vpop.f32.mrb[0].mxu0
        %v640 = vadd.f32 %v571, %v639
        %v641 = vpop.f32.mrb[0].mxu0
        %642 = vmatprep.mubr.f32.mxu0 %v352
        %643 = vmatmul.mubr.f32.gmra.mrb[0].mxu0 %v434
        %v644 = vpop.f32.mrb[0].mxu0
        %v645 = vadd.f32 %v571, %v644
        %v646 = vpop.f32.mrb[0].mxu0
        %647 = vdwg.mxu0
        %648 = vmatprep.subr.mxu0 0.0
        %649 = vmatpush1.msra.mxu0 %v550
        %650 = vmatprep.subr.mxu0 0.0
        %651 = vmatpush1.msra.mxu0 %v551
        %652 = vmatprep.subr.mxu0 0.0
        %653 = vmatpush1.msra.mxu0 %v552
        %654 = vmatprep.subr.mxu0 0.0
        %655 = vmatpush1.msra.mxu0 %v553
        %656 = vmatprep.subr.mxu0 0.0
        %657 = vmatpush1.msra.mxu0 %v554
        %658 = vmatprep.subr.mxu0 0.0
        %659 = vmatpush1.msra.mxu0 %v555
        %660 = vmatprep.subr.mxu0 0.0
        %661 = vmatpush1.msra.mxu0 %v556
        %662 = vmatprep.subr.mxu0 0.0
        %663 = vmatpush1.msra.mxu0 %v557
        %664 = vmatprep.subr.mxu0 0.0
        %665 = vmatpush1.msra.mxu0 %v558
        %666 = vmatprep.subr.mxu0 0.0
        %667 = vmatpush1.msra.mxu0 %v559
        %668 = vmatprep.subr.mxu0 0.0
        %669 = vmatpush1.msra.mxu0 %v560
        %670 = vmatprep.subr.mxu0 0.0
        %671 = vmatpush1.msra.mxu0 %v561
        %672 = vmatprep.subr.mxu0 0.0
        %673 = vmatpush1.msra.mxu0 %v562
        %674 = vmatprep.subr.mxu0 0.0
        %675 = vmatpush1.msra.mxu0 %v563
        %676 = vmatprep.subr.mxu0 0.0
        %677 = vmatpush1.msra.mxu0 %v564
        %678 = vmatprep.subr.mxu0 0.0
        %679 = vmatpush1.msra.mxu0 %v565
        %680 = vmatprep.subr.mxu0 0.0
        %681 = vmatpush1.msra.mxu0 0.0
        %682 = vmatprep.subr.mxu0 0.0
        %683 = vmatpush1.msra.mxu0 0.0
        %684 = vmatprep.subr.mxu0 0.0
        %685 = vmatpush1.msra.mxu0 0.0
        %686 = vmatprep.subr.mxu0 0.0
        %687 = vmatpush1.msra.mxu0 0.0
        %688 = vmatprep.subr.mxu0 0.0
        %689 = vmatpush1.msra.mxu0 0.0
        %690 = vmatprep.subr.mxu0 0.0
        %691 = vmatpush1.msra.mxu0 0.0
        %692 = vmatprep.subr.mxu0 0.0
        %693 = vmatpush1.msra.mxu0 0.0
        %694 = vmatprep.subr.mxu0 0.0
        %695 = vmatpush1.msra.mxu0 0.0
        %696 = vmatprep.subr.mxu0 0.0
        %697 = vmatpush1.msra.mxu0 0.0
        %698 = vmatprep.subr.mxu0 0.0
        %699 = vmatpush1.msra.mxu0 0.0
        %700 = vmatprep.subr.mxu0 0.0
        %701 = vmatpush1.msra.mxu0 0.0
        %702 = vmatprep.subr.mxu0 0.0
        %703 = vmatpush1.msra.mxu0 0.0
        %704 = vmatprep.subr.mxu0 0.0
        %705 = vmatpush1.msra.mxu0 0.0
        %706 = vmatprep.subr.mxu0 0.0
        %707 = vmatpush1.msra.mxu0 0.0
        %708 = vmatprep.subr.mxu0 0.0
        %709 = vmatpush1.msra.mxu0 0.0
        %710 = vmatprep.subr.mxu0 0.0
        %711 = vmatpush1.msra.mxu0 0.0
        %712 = vmatprep.mubr.f32.mxu0 0.0
        %713 = vmatmul.mubr.f32.gmra.mrb[0].mxu0 %v510
        %v714 = vpop.f32.mrb[0].mxu0
        %v715 = vadd.f32 %v640, %v714
        %v716 = vpop.f32.mrb[0].mxu0
        %717 = vmatprep.mubr.f32.mxu0 0.0
        %718 = vmatmul.mubr.f32.gmra.mrb[0].mxu0 %v515
        %v719 = vpop.f32.mrb[0].mxu0
        %v720 = vadd.f32 %v645, %v719
        %v721 = vpop.f32.mrb[0].mxu0
        %722 = vdwg.mxu0
        %v723 = vadd.f32 %v715, %v720
        %v724 = vrot.slane %v723, 4
        %v725 = vadd.f32 %v723, %v724
        %v726 = vrot.slane %v725, 2
        %v727 = vadd.f32 %v725, %v726
        %v728 = vrot.slane %v727, 1
        %v729 = vadd.f32 %v727, %v728
        %730 = vmatprep.subr.mxu0 0.0
        %731 = vmatpush1.msra.mxu0 %v335
        %732 = vmatprep.subr.mxu0 0.0
        %733 = vmatpush1.msra.mxu0 %v336
        %734 = vmatprep.subr.mxu0 0.0
        %735 = vmatpush1.msra.mxu0 %v337
        %736 = vmatprep.subr.mxu0 0.0
        %737 = vmatpush1.msra.mxu0 %v338
        %738 = vmatprep.subr.mxu0 0.0
        %739 = vmatpush1.msra.mxu0 %v339
        %740 = vmatprep.subr.mxu0 0.0
        %741 = vmatpush1.msra.mxu0 %v340
        %742 = vmatprep.subr.mxu0 0.0
        %743 = vmatpush1.msra.mxu0 %v341
        %744 = vmatprep.subr.mxu0 0.0
        %745 = vmatpush1.msra.mxu0 %v342
        %746 = vmatprep.subr.mxu0 0.0
        %747 = vmatpush1.msra.mxu0 %v343
        %748 = vmatprep.subr.mxu0 0.0
        %749 = vmatpush1.msra.mxu0 %v344
        %750 = vmatprep.subr.mxu0 0.0
        %751 = vmatpush1.msra.mxu0 %v345
        %752 = vmatprep.subr.mxu0 0.0
        %753 = vmatpush1.msra.mxu0 %v346
        %754 = vmatprep.subr.mxu0 0.0
        %755 = vmatpush1.msra.mxu0 %v347
        %756 = vmatprep.subr.mxu0 0.0
        %757 = vmatpush1.msra.mxu0 %v348
        %758 = vmatprep.subr.mxu0 0.0
        %759 = vmatpush1.msra.mxu0 %v349
        %760 = vmatprep.subr.mxu0 0.0
        %761 = vmatpush1.msra.mxu0 %v350
        %762 = vmatprep.subr.mxu0 0.0
        %763 = vmatpush1.msra.mxu0 0.0
        %764 = vmatprep.subr.mxu0 0.0
        %765 = vmatpush1.msra.mxu0 0.0
        %766 = vmatprep.subr.mxu0 0.0
        %767 = vmatpush1.msra.mxu0 0.0
        %768 = vmatprep.subr.mxu0 0.0
        %769 = vmatpush1.msra.mxu0 0.0
        %770 = vmatprep.subr.mxu0 0.0
        %771 = vmatpush1.msra.mxu0 0.0
        %772 = vmatprep.subr.mxu0 0.0
        %773 = vmatpush1.msra.mxu0 0.0
        %774 = vmatprep.subr.mxu0 0.0
        %775 = vmatpush1.msra.mxu0 0.0
        %776 = vmatprep.subr.mxu0 0.0
        %777 = vmatpush1.msra.mxu0 0.0
        %778 = vmatprep.subr.mxu0 0.0
        %779 = vmatpush1.msra.mxu0 0.0
        %780 = vmatprep.subr.mxu0 0.0
        %781 = vmatpush1.msra.mxu0 0.0
        %782 = vmatprep.subr.mxu0 0.0
        %783 = vmatpush1.msra.mxu0 0.0
        %784 = vmatprep.subr.mxu0 0.0
        %785 = vmatpush1.msra.mxu0 0.0
        %786 = vmatprep.subr.mxu0 0.0
        %787 = vmatpush1.msra.mxu0 0.0
        %788 = vmatprep.subr.mxu0 0.0
        %789 = vmatpush1.msra.mxu0 0.0
        %790 = vmatprep.subr.mxu0 0.0
        %791 = vmatpush1.msra.mxu0 0.0
        %792 = vmatprep.subr.mxu0 0.0
        %793 = vmatpush1.msra.mxu0 0.0
        %794 = vmatprep.mubr.f32.mxu0 0.0
        %795 = vmatmul.mubr.f32.gmra.mrb[0].mxu0 %v729
        %v796 = vpop.f32.mrb[0].mxu0
        %v797 = vadd.f32 0.0, %v796
        %v798 = vpop.f32.mrb[0].mxu0
        %799 = vdwg.mxu0
        %v800 = vlaneseq
        %v801 = vshrl.u32 %v800, 7
        %v802 = vsub.s32 0, %v801
        %v803 = vrot.slane %v797, %v802
        %v804 = vsub.f32 %v715, %v803
        %v805 = vsub.f32 %v720, %v803
        %v806 = vmul.f32 %v804, %v804
        %v807 = vmul.f32 %v805, %v805
        %v808 = vadd.f32 %v806, %v807
        %v809 = vrot.slane %v808, 4
        %v810 = vadd.f32 %v808, %v809
        %v811 = vrot.slane %v810, 2
        %v812 = vadd.f32 %v810, %v811
        %v813 = vrot.slane %v812, 1
        %v814 = vadd.f32 %v812, %v813
        %815 = vmatprep.subr.mxu0 0.0
        %816 = vmatpush1.msra.mxu0 %v335
        %817 = vmatprep.subr.mxu0 0.0
        %818 = vmatpush1.msra.mxu0 %v336
        %819 = vmatprep.subr.mxu0 0.0
        %820 = vmatpush1.msra.mxu0 %v337
        %821 = vmatprep.subr.mxu0 0.0
        %822 = vmatpush1.msra.mxu0 %v338
        %823 = vmatprep.subr.mxu0 0.0
        %824 = vmatpush1.msra.mxu0 %v339
        %825 = vmatprep.subr.mxu0 0.0
        %826 = vmatpush1.msra.mxu0 %v340
        %827 = vmatprep.subr.mxu0 0.0
        %828 = vmatpush1.msra.mxu0 %v341
        %829 = vmatprep.subr.mxu0 0.0
        %830 = vmatpush1.msra.mxu0 %v342
        %831 = vmatprep.subr.mxu0 0.0
        %832 = vmatpush1.msra.mxu0 %v343
        %833 = vmatprep.subr.mxu0 0.0
        %834 = vmatpush1.msra.mxu0 %v344
        %835 = vmatprep.subr.mxu0 0.0
        %836 = vmatpush1.msra.mxu0 %v345
        %837 = vmatprep.subr.mxu0 0.0
        %838 = vmatpush1.msra.mxu0 %v346
        %839 = vmatprep.subr.mxu0 0.0
        %840 = vmatpush1.msra.mxu0 %v347
        %841 = vmatprep.subr.mxu0 0.0
        %842 = vmatpush1.msra.mxu0 %v348
        %843 = vmatprep.subr.mxu0 0.0
        %844 = vmatpush1.msra.mxu0 %v349
        %845 = vmatprep.subr.mxu0 0.0
        %846 = vmatpush1.msra.mxu0 %v350
        %847 = vmatprep.subr.mxu0 0.0
        %848 = vmatpush1.msra.mxu0 0.0
        %849 = vmatprep.subr.mxu0 0.0
        %850 = vmatpush1.msra.mxu0 0.0
        %851 = vmatprep.subr.mxu0 0.0
        %852 = vmatpush1.msra.mxu0 0.0
        %853 = vmatprep.subr.mxu0 0.0
        %854 = vmatpush1.msra.mxu0 0.0
        %855 = vmatprep.subr.mxu0 0.0
        %856 = vmatpush1.msra.mxu0 0.0
        %857 = vmatprep.subr.mxu0 0.0
        %858 = vmatpush1.msra.mxu0 0.0
        %859 = vmatprep.subr.mxu0 0.0
        %860 = vmatpush1.msra.mxu0 0.0
        %861 = vmatprep.subr.mxu0 0.0
        %862 = vmatpush1.msra.mxu0 0.0
        %863 = vmatprep.subr.mxu0 0.0
        %864 = vmatpush1.msra.mxu0 0.0
        %865 = vmatprep.subr.mxu0 0.0
        %866 = vmatpush1.msra.mxu0 0.0
        %867 = vmatprep.subr.mxu0 0.0
        %868 = vmatpush1.msra.mxu0 0.0
        %869 = vmatprep.subr.mxu0 0.0
        %870 = vmatpush1.msra.mxu0 0.0
        %871 = vmatprep.subr.mxu0 0.0
        %872 = vmatpush1.msra.mxu0 0.0
        %873 = vmatprep.subr.mxu0 0.0
        %874 = vmatpush1.msra.mxu0 0.0
        %875 = vmatprep.subr.mxu0 0.0
        %876 = vmatpush1.msra.mxu0 0.0
        %877 = vmatprep.subr.mxu0 0.0
        %878 = vmatpush1.msra.mxu0 0.0
        %879 = vmatprep.mubr.f32.mxu0 0.0
        %880 = vmatmul.mubr.f32.gmra.mrb[0].mxu0 %v814
        %v881 = vpop.f32.mrb[0].mxu0
        %v882 = vadd.f32 1e-05, %v881
        %v883 = vpop.f32.mrb[0].mxu0
        %884 = vdwg.mxu0
        %v885 = vrsqrt.pop %v882
        %v886 = vlaneseq
        %v887 = vshrl.u32 %v886, 7
        %v888 = vsub.s32 0, %v887
        %v889 = vrot.slane %v885, %v888
        %v890 = vmul.f32 %v804, %v889
        %v891 = vmul.f32 %v805, %v889
        %v892 = vmax.f32 %v890, 0.0
        %v893 = vmax.f32 %v891, 0.0
        %894 = vmatprep.subr.mxu0 0.0
        %895 = vmatpush1.msra.mxu0 %v892
        %896 = vmatprep.subr.mxu0 0.0
        %897 = vmatpush1.msra.mxu0 %v893
        %898 = vmatprep.subr.mxu0 0.0
        %899 = vmatpush1.msra.mxu0 0.0
        %900 = vmatprep.subr.mxu0 0.0
        %901 = vmatpush1.msra.mxu0 0.0
        %902 = vmatprep.subr.mxu0 0.0
        %903 = vmatpush1.msra.mxu0 0.0
        %904 = vmatprep.subr.mxu0 0.0
        %905 = vmatpush1.msra.mxu0 0.0
        %906 = vmatprep.subr.mxu0 0.0
        %907 = vmatpush1.msra.mxu0 0.0
        %908 = vmatprep.subr.mxu0 0.0
        %909 = vmatpush1.msra.mxu0 0.0
        %910 = vmatprep.subr.mxu0 0.0
        %911 = vmatpush1.msra.mxu0 0.0
        %912 = vmatprep.subr.mxu0 0.0
        %913 = vmatpush1.msra.mxu0 0.0
        %914 = vmatprep.subr.mxu0 0.0
        %915 = vmatpush1.msra.mxu0 0.0
        %916 = vmatprep.subr.mxu0 0.0
        %917 = vmatpush1.msra.mxu0 0.0
        %918 = vmatprep.subr.mxu0 0.0
        %919 = vmatpush1.msra.mxu0 0.0
        %920 = vmatprep.subr.mxu0 0.0
        %921 = vmatpush1.msra.mxu0 0.0
        %922 = vmatprep.subr.mxu0 0.0
        %923 = vmatpush1.msra.mxu0 0.0
        %924 = vmatprep.subr.mxu0 0.0
        %925 = vmatpush1.msra.mxu0 0.0
        %926 = vmatprep.subr.mxu0 0.0
        %927 = vmatpush1.msra.mxu0 0.0
        %928 = vmatprep.subr.mxu0 0.0
        %929 = vmatpush1.msra.mxu0 0.0
        %930 = vmatprep.subr.mxu0 0.0
        %931 = vmatpush1.msra.mxu0 0.0
        %932 = vmatprep.subr.mxu0 0.0
        %933 = vmatpush1.msra.mxu0 0.0
        %934 = vmatprep.subr.mxu0 0.0
        %935 = vmatpush1.msra.mxu0 0.0
        %936 = vmatprep.subr.mxu0 0.0
        %937 = vmatpush1.msra.mxu0 0.0
        %938 = vmatprep.subr.mxu0 0.0
        %939 = vmatpush1.msra.mxu0 0.0
        %940 = vmatprep.subr.mxu0 0.0
        %941 = vmatpush1.msra.mxu0 0.0
        %942 = vmatprep.subr.mxu0 0.0
        %943 = vmatpush1.msra.mxu0 0.0
        %944 = vmatprep.subr.mxu0 0.0
        %945 = vmatpush1.msra.mxu0 0.0
        %946 = vmatprep.subr.mxu0 0.0
        %947 = vmatpush1.msra.mxu0 0.0
        %948 = vmatprep.subr.mxu0 0.0
        %949 = vmatpush1.msra.mxu0 0.0
        %950 = vmatprep.subr.mxu0 0.0
        %951 = vmatpush1.msra.mxu0 0.0
        %952 = vmatprep.subr.mxu0 0.0
        %953 = vmatpush1.msra.mxu0 0.0
        %954 = vmatprep.subr.mxu0 0.0
        %955 = vmatpush1.msra.mxu0 0.0
        %956 = vmatprep.subr.mxu0 0.0
        %957 = vmatpush1.msra.mxu0 0.0
        %958 = vmatprep.mubr.f32.mxu0 0.0
        %959 = vmatmul.mubr.f32.gmra.mrb[0].mxu0 %v357
        %v960 = vpop.f32.mrb[0].mxu0
        %v961 = vadd.f32 0.0, %v960
        %v962 = vpop.f32.mrb[0].mxu0
        %963 = vmatprep.mubr.f32.mxu0 0.0
        %964 = vmatmul.mubr.f32.gmra.mrb[0].mxu0 %v360
        %v965 = vpop.f32.mrb[0].mxu0
        %v966 = vadd.f32 0.0, %v965
        %v967 = vpop.f32.mrb[0].mxu0
        %968 = vdwg.mxu0
        %969 = vmatprep.subr.mxu0 0.0
        %970 = vmatpush1.msra.mxu0 %v892
        %971 = vmatprep.subr.mxu0 0.0
        %972 = vmatpush1.msra.mxu0 %v893
        %973 = vmatprep.subr.mxu0 0.0
        %974 = vmatpush1.msra.mxu0 0.0
        %975 = vmatprep.subr.mxu0 0.0
        %976 = vmatpush1.msra.mxu0 0.0
        %977 = vmatprep.subr.mxu0 0.0
        %978 = vmatpush1.msra.mxu0 0.0
        %979 = vmatprep.subr.mxu0 0.0
        %980 = vmatpush1.msra.mxu0 0.0
        %981 = vmatprep.subr.mxu0 0.0
        %982 = vmatpush1.msra.mxu0 0.0
        %983 = vmatprep.subr.mxu0 0.0
        %984 = vmatpush1.msra.mxu0 0.0
        %985 = vmatprep.subr.mxu0 0.0
        %986 = vmatpush1.msra.mxu0 0.0
        %987 = vmatprep.subr.mxu0 0.0
        %988 = vmatpush1.msra.mxu0 0.0
        %989 = vmatprep.subr.mxu0 0.0
        %990 = vmatpush1.msra.mxu0 0.0
        %991 = vmatprep.subr.mxu0 0.0
        %992 = vmatpush1.msra.mxu0 0.0
        %993 = vmatprep.subr.mxu0 0.0
        %994 = vmatpush1.msra.mxu0 0.0
        %995 = vmatprep.subr.mxu0 0.0
        %996 = vmatpush1.msra.mxu0 0.0
        %997 = vmatprep.subr.mxu0 0.0
        %998 = vmatpush1.msra.mxu0 0.0
        %999 = vmatprep.subr.mxu0 0.0
        %1000 = vmatpush1.msra.mxu0 0.0
        %1001 = vmatprep.subr.mxu0 0.0
        %1002 = vmatpush1.msra.mxu0 0.0
        %1003 = vmatprep.subr.mxu0 0.0
        %1004 = vmatpush1.msra.mxu0 0.0
        %1005 = vmatprep.subr.mxu0 0.0
        %1006 = vmatpush1.msra.mxu0 0.0
        %1007 = vmatprep.subr.mxu0 0.0
        %1008 = vmatpush1.msra.mxu0 0.0
        %1009 = vmatprep.subr.mxu0 0.0
        %1010 = vmatpush1.msra.mxu0 0.0
        %1011 = vmatprep.subr.mxu0 0.0
        %1012 = vmatpush1.msra.mxu0 0.0
        %1013 = vmatprep.subr.mxu0 0.0
        %1014 = vmatpush1.msra.mxu0 0.0
        %1015 = vmatprep.subr.mxu0 0.0
        %1016 = vmatpush1.msra.mxu0 0.0
        %1017 = vmatprep.subr.mxu0 0.0
        %1018 = vmatpush1.msra.mxu0 0.0
        %1019 = vmatprep.subr.mxu0 0.0
        %1020 = vmatpush1.msra.mxu0 0.0
        %1021 = vmatprep.subr.mxu0 0.0
        %1022 = vmatpush1.msra.mxu0 0.0
        %1023 = vmatprep.subr.mxu0 0.0
        %1024 = vmatpush1.msra.mxu0 0.0
        %1025 = vmatprep.subr.mxu0 0.0
        %1026 = vmatpush1.msra.mxu0 0.0
        %1027 = vmatprep.subr.mxu0 0.0
        %1028 = vmatpush1.msra.mxu0 0.0
        %1029 = vmatprep.subr.mxu0 0.0
        %1030 = vmatpush1.msra.mxu0 0.0
        %1031 = vmatprep.subr.mxu0 0.0
        %1032 = vmatpush1.msra.mxu0 0.0
        %1033 = vmatprep.mubr.f32.mxu0 0.0
        %1034 = vmatmul.mubr.f32.gmra.mrb[0].mxu0 %v438
        %v1035 = vpop.f32.mrb[0].mxu0
        %v1036 = vadd.f32 0.0, %v1035
        %v1037 = vpop.f32.mrb[0].mxu0
        %1038 = vmatprep.mubr.f32.mxu0 0.0
        %1039 = vmatmul.mubr.f32.gmra.mrb[0].mxu0 %v441
        %v1040 = vpop.f32.mrb[0].mxu0
        %v1041 = vadd.f32 0.0, %v1040
        %v1042 = vpop.f32.mrb[0].mxu0
        %1043 = vdwg.mxu0
        %v1044 = vld [vmem:[#allocation8] sm:$0xff]
        %v1045 = vld [vmem:[#allocation8 + $0x8] sm:$0xff]
        %v1046 = vld [vmem:[#allocation8 + $0x10] sm:$0xff]
        %v1047 = vld [vmem:[#allocation8 + $0x18] sm:$0xff]
        %v1048 = vld [vmem:[#allocation8 + $0x20] sm:$0xff]
        %v1049 = vld [vmem:[#allocation8 + $0x28] sm:$0xff]
        %v1050 = vld [vmem:[#allocation8 + $0x30] sm:$0xff]
        %v1051 = vld [vmem:[#allocation8 + $0x38] sm:$0xff]
        %v1052 = vld [vmem:[#allocation8 + $0x40] sm:$0xff]
        %v1053 = vld [vmem:[#allocation8 + $0x48] sm:$0xff]
        %v1054 = vld [vmem:[#allocation8 + $0x50] sm:$0xff]
        %v1055 = vld [vmem:[#allocation8 + $0x58] sm:$0xff]
        %v1056 = vld [vmem:[#allocation8 + $0x60] sm:$0xff]
        %v1057 = vld [vmem:[#allocation8 + $0x68] sm:$0xff]
        %v1058 = vld [vmem:[#allocation8 + $0x70] sm:$0xff]
        %v1059 = vld [vmem:[#allocation8 + $0x78] sm:$0xff]
        %v1060 = vld [vmem:[#allocation8 + $0x80] sm:$0xff]
        %v1061 = vld [vmem:[#allocation8 + $0x88] sm:$0xff]
        %v1062 = vld [vmem:[#allocation8 + $0x90] sm:$0xff]
        %v1063 = vld [vmem:[#allocation8 + $0x98] sm:$0xff]
        %v1064 = vld [vmem:[#allocation8 + $0xa0] sm:$0xff]
        %v1065 = vld [vmem:[#allocation8 + $0xa8] sm:$0xff]
        %v1066 = vld [vmem:[#allocation8 + $0xb0] sm:$0xff]
        %v1067 = vld [vmem:[#allocation8 + $0xb8] sm:$0xff]
        %v1068 = vld [vmem:[#allocation8 + $0xc0] sm:$0xff]
        %v1069 = vld [vmem:[#allocation8 + $0xc8] sm:$0xff]
        %v1070 = vld [vmem:[#allocation8 + $0xd0] sm:$0xff]
        %v1071 = vld [vmem:[#allocation8 + $0xd8] sm:$0xff]
        %v1072 = vld [vmem:[#allocation8 + $0xe0] sm:$0xff]
        %v1073 = vld [vmem:[#allocation8 + $0xe8] sm:$0xff]
        %v1074 = vld [vmem:[#allocation8 + $0xf0] sm:$0xff]
        %v1075 = vld [vmem:[#allocation8 + $0xf8] sm:$0xff]
        %v1076 = vld [vmem:[#allocation8 + $0x100] sm:$0xff]
        %v1077 = vld [vmem:[#allocation8 + $0x108] sm:$0xff]
        %v1078 = vld [vmem:[#allocation8 + $0x110] sm:$0xff]
        %v1079 = vld [vmem:[#allocation8 + $0x118] sm:$0xff]
        %v1080 = vld [vmem:[#allocation8 + $0x120] sm:$0xff]
        %v1081 = vld [vmem:[#allocation8 + $0x128] sm:$0xff]
        %v1082 = vld [vmem:[#allocation8 + $0x130] sm:$0xff]
        %v1083 = vld [vmem:[#allocation8 + $0x138] sm:$0xff]
        %v1084 = vld [vmem:[#allocation8 + $0x140] sm:$0xff]
        %v1085 = vld [vmem:[#allocation8 + $0x148] sm:$0xff]
        %v1086 = vld [vmem:[#allocation8 + $0x150] sm:$0xff]
        %v1087 = vld [vmem:[#allocation8 + $0x158] sm:$0xff]
        %v1088 = vld [vmem:[#allocation8 + $0x160] sm:$0xff]
        %v1089 = vld [vmem:[#allocation8 + $0x168] sm:$0xff]
        %v1090 = vld [vmem:[#allocation8 + $0x170] sm:$0xff]
        %v1091 = vld [vmem:[#allocation8 + $0x178] sm:$0xff]
        %v1092 = vld [vmem:[%s4] sm:$0x1]
        %v1094 = vlaneseq
        %v1095 = vshrl.u32 %v1094, 7
        %v1096 = vsub.s32 0, %v1095
        %v1097 = vrot.slane %v1092, %v1096
        %1099 = vmatprep.subr.mxu0 0.0
        %1100 = vmatpush1.msra.mxu0 %v1044
        %1101 = vmatprep.subr.mxu0 0.0
        %1102 = vmatpush1.msra.mxu0 %v1045
        %1103 = vmatprep.subr.mxu0 0.0
        %1104 = vmatpush1.msra.mxu0 %v1046
        %1105 = vmatprep.subr.mxu0 0.0
        %1106 = vmatpush1.msra.mxu0 %v1047
        %1107 = vmatprep.subr.mxu0 0.0
        %1108 = vmatpush1.msra.mxu0 %v1048
        %1109 = vmatprep.subr.mxu0 0.0
        %1110 = vmatpush1.msra.mxu0 %v1049
        %1111 = vmatprep.subr.mxu0 0.0
        %1112 = vmatpush1.msra.mxu0 %v1050
        %1113 = vmatprep.subr.mxu0 0.0
        %1114 = vmatpush1.msra.mxu0 %v1051
        %1115 = vmatprep.subr.mxu0 0.0
        %1116 = vmatpush1.msra.mxu0 %v1052
        %1117 = vmatprep.subr.mxu0 0.0
        %1118 = vmatpush1.msra.mxu0 %v1053
        %1119 = vmatprep.subr.mxu0 0.0
        %1120 = vmatpush1.msra.mxu0 %v1054
        %1121 = vmatprep.subr.mxu0 0.0
        %1122 = vmatpush1.msra.mxu0 %v1055
        %1123 = vmatprep.subr.mxu0 0.0
        %1124 = vmatpush1.msra.mxu0 %v1056
        %1125 = vmatprep.subr.mxu0 0.0
        %1126 = vmatpush1.msra.mxu0 %v1057
        %1127 = vmatprep.subr.mxu0 0.0
        %1128 = vmatpush1.msra.mxu0 %v1058
        %1129 = vmatprep.subr.mxu0 0.0
        %1130 = vmatpush1.msra.mxu0 %v1059
        %1131 = vmatprep.subr.mxu0 0.0
        %1132 = vmatpush1.msra.mxu0 %v1060
        %1133 = vmatprep.subr.mxu0 0.0
        %1134 = vmatpush1.msra.mxu0 %v1061
        %1135 = vmatprep.subr.mxu0 0.0
        %1136 = vmatpush1.msra.mxu0 %v1062
        %1137 = vmatprep.subr.mxu0 0.0
        %1138 = vmatpush1.msra.mxu0 %v1063
        %1139 = vmatprep.subr.mxu0 0.0
        %1140 = vmatpush1.msra.mxu0 %v1064
        %1141 = vmatprep.subr.mxu0 0.0
        %1142 = vmatpush1.msra.mxu0 %v1065
        %1143 = vmatprep.subr.mxu0 0.0
        %1144 = vmatpush1.msra.mxu0 %v1066
        %1145 = vmatprep.subr.mxu0 0.0
        %1146 = vmatpush1.msra.mxu0 %v1067
        %1147 = vmatprep.subr.mxu0 0.0
        %1148 = vmatpush1.msra.mxu0 %v1068
        %1149 = vmatprep.subr.mxu0 0.0
        %1150 = vmatpush1.msra.mxu0 %v1069
        %1151 = vmatprep.subr.mxu0 0.0
        %1152 = vmatpush1.msra.mxu0 %v1070
        %1153 = vmatprep.subr.mxu0 0.0
        %1154 = vmatpush1.msra.mxu0 %v1071
        %1155 = vmatprep.subr.mxu0 0.0
        %1156 = vmatpush1.msra.mxu0 %v1072
        %1157 = vmatprep.subr.mxu0 0.0
        %1158 = vmatpush1.msra.mxu0 %v1073
        %1159 = vmatprep.subr.mxu0 0.0
        %1160 = vmatpush1.msra.mxu0 %v1074
        %1161 = vmatprep.subr.mxu0 0.0
        %1162 = vmatpush1.msra.mxu0 %v1075
        %1163 = vmatprep.mubr.f32.mxu0 %v892
        %1164 = vmatmul.mubr.f32.gmra.mrb[0].mxu0 %v961
        %v1165 = vpop.f32.mrb[0].mxu0
        %v1166 = vadd.f32 %v1097, %v1165
        %v1167 = vpop.f32.mrb[0].mxu0
        %1168 = vmatprep.mubr.f32.mxu0 %v893
        %1169 = vmatmul.mubr.f32.gmra.mrb[0].mxu0 %v966
        %v1170 = vpop.f32.mrb[0].mxu0
        %v1171 = vadd.f32 %v1097, %v1170
        %v1172 = vpop.f32.mrb[0].mxu0
        %1173 = vdwg.mxu0
        %1174 = vmatprep.subr.mxu0 0.0
        %1175 = vmatpush1.msra.mxu0 %v1076
        %1176 = vmatprep.subr.mxu0 0.0
        %1177 = vmatpush1.msra.mxu0 %v1077
        %1178 = vmatprep.subr.mxu0 0.0
        %1179 = vmatpush1.msra.mxu0 %v1078
        %1180 = vmatprep.subr.mxu0 0.0
        %1181 = vmatpush1.msra.mxu0 %v1079
        %1182 = vmatprep.subr.mxu0 0.0
        %1183 = vmatpush1.msra.mxu0 %v1080
        %1184 = vmatprep.subr.mxu0 0.0
        %1185 = vmatpush1.msra.mxu0 %v1081
        %1186 = vmatprep.subr.mxu0 0.0
        %1187 = vmatpush1.msra.mxu0 %v1082
        %1188 = vmatprep.subr.mxu0 0.0
        %1189 = vmatpush1.msra.mxu0 %v1083
        %1190 = vmatprep.subr.mxu0 0.0
        %1191 = vmatpush1.msra.mxu0 %v1084
        %1192 = vmatprep.subr.mxu0 0.0
        %1193 = vmatpush1.msra.mxu0 %v1085
        %1194 = vmatprep.subr.mxu0 0.0
        %1195 = vmatpush1.msra.mxu0 %v1086
        %1196 = vmatprep.subr.mxu0 0.0
        %1197 = vmatpush1.msra.mxu0 %v1087
        %1198 = vmatprep.subr.mxu0 0.0
        %1199 = vmatpush1.msra.mxu0 %v1088
        %1200 = vmatprep.subr.mxu0 0.0
        %1201 = vmatpush1.msra.mxu0 %v1089
        %1202 = vmatprep.subr.mxu0 0.0
        %1203 = vmatpush1.msra.mxu0 %v1090
        %1204 = vmatprep.subr.mxu0 0.0
        %1205 = vmatpush1.msra.mxu0 %v1091
        %1206 = vmatprep.subr.mxu0 0.0
        %1207 = vmatpush1.msra.mxu0 0.0
        %1208 = vmatprep.subr.mxu0 0.0
        %1209 = vmatpush1.msra.mxu0 0.0
        %1210 = vmatprep.subr.mxu0 0.0
        %1211 = vmatpush1.msra.mxu0 0.0
        %1212 = vmatprep.subr.mxu0 0.0
        %1213 = vmatpush1.msra.mxu0 0.0
        %1214 = vmatprep.subr.mxu0 0.0
        %1215 = vmatpush1.msra.mxu0 0.0
        %1216 = vmatprep.subr.mxu0 0.0
        %1217 = vmatpush1.msra.mxu0 0.0
        %1218 = vmatprep.subr.mxu0 0.0
        %1219 = vmatpush1.msra.mxu0 0.0
        %1220 = vmatprep.subr.mxu0 0.0
        %1221 = vmatpush1.msra.mxu0 0.0
        %1222 = vmatprep.subr.mxu0 0.0
        %1223 = vmatpush1.msra.mxu0 0.0
        %1224 = vmatprep.subr.mxu0 0.0
        %1225 = vmatpush1.msra.mxu0 0.0
        %1226 = vmatprep.subr.mxu0 0.0
        %1227 = vmatpush1.msra.mxu0 0.0
        %1228 = vmatprep.subr.mxu0 0.0
        %1229 = vmatpush1.msra.mxu0 0.0
        %1230 = vmatprep.subr.mxu0 0.0
        %1231 = vmatpush1.msra.mxu0 0.0
        %1232 = vmatprep.subr.mxu0 0.0
        %1233 = vmatpush1.msra.mxu0 0.0
        %1234 = vmatprep.subr.mxu0 0.0
        %1235 = vmatpush1.msra.mxu0 0.0
        %1236 = vmatprep.subr.mxu0 0.0
        %1237 = vmatpush1.msra.mxu0 0.0
        %1238 = vmatprep.mubr.f32.mxu0 0.0
        %1239 = vmatmul.mubr.f32.gmra.mrb[0].mxu0 %v1036
        %v1240 = vpop.f32.mrb[0].mxu0
        %v1241 = vadd.f32 %v1166, %v1240
        %v1242 = vpop.f32.mrb[0].mxu0
        %1243 = vmatprep.mubr.f32.mxu0 0.0
        %1244 = vmatmul.mubr.f32.gmra.mrb[0].mxu0 %v1041
        %v1245 = vpop.f32.mrb[0].mxu0
        %v1246 = vadd.f32 %v1171, %v1245
        %v1247 = vpop.f32.mrb[0].mxu0
        %1248 = vdwg.mxu0
        %v1249 = vadd.f32 %v1241, %v1246
        %v1250 = vrot.slane %v1249, 4
        %v1251 = vadd.f32 %v1249, %v1250
        %v1252 = vrot.slane %v1251, 2
        %v1253 = vadd.f32 %v1251, %v1252
        %v1254 = vrot.slane %v1253, 1
        %v1255 = vadd.f32 %v1253, %v1254
        %1256 = vmatprep.subr.mxu0 0.0
        %1257 = vmatpush1.msra.mxu0 %v335
        %1258 = vmatprep.subr.mxu0 0.0
        %1259 = vmatpush1.msra.mxu0 %v336
        %1260 = vmatprep.subr.mxu0 0.0
        %1261 = vmatpush1.msra.mxu0 %v337
        %1262 = vmatprep.subr.mxu0 0.0
        %1263 = vmatpush1.msra.mxu0 %v338
        %1264 = vmatprep.subr.mxu0 0.0
        %1265 = vmatpush1.msra.mxu0 %v339
        %1266 = vmatprep.subr.mxu0 0.0
        %1267 = vmatpush1.msra.mxu0 %v340
        %1268 = vmatprep.subr.mxu0 0.0
        %1269 = vmatpush1.msra.mxu0 %v341
        %1270 = vmatprep.subr.mxu0 0.0
        %1271 = vmatpush1.msra.mxu0 %v342
        %1272 = vmatprep.subr.mxu0 0.0
        %1273 = vmatpush1.msra.mxu0 %v343
        %1274 = vmatprep.subr.mxu0 0.0
        %1275 = vmatpush1.msra.mxu0 %v344
        %1276 = vmatprep.subr.mxu0 0.0
        %1277 = vmatpush1.msra.mxu0 %v345
        %1278 = vmatprep.subr.mxu0 0.0
        %1279 = vmatpush1.msra.mxu0 %v346
        %1280 = vmatprep.subr.mxu0 0.0
        %1281 = vmatpush1.msra.mxu0 %v347
        %1282 = vmatprep.subr.mxu0 0.0
        %1283 = vmatpush1.msra.mxu0 %v348
        %1284 = vmatprep.subr.mxu0 0.0
        %1285 = vmatpush1.msra.mxu0 %v349
        %1286 = vmatprep.subr.mxu0 0.0
        %1287 = vmatpush1.msra.mxu0 %v350
        %1288 = vmatprep.subr.mxu0 0.0
        %1289 = vmatpush1.msra.mxu0 0.0
        %1290 = vmatprep.subr.mxu0 0.0
        %1291 = vmatpush1.msra.mxu0 0.0
        %1292 = vmatprep.subr.mxu0 0.0
        %1293 = vmatpush1.msra.mxu0 0.0
        %1294 = vmatprep.subr.mxu0 0.0
        %1295 = vmatpush1.msra.mxu0 0.0
        %1296 = vmatprep.subr.mxu0 0.0
        %1297 = vmatpush1.msra.mxu0 0.0
        %1298 = vmatprep.subr.mxu0 0.0
        %1299 = vmatpush1.msra.mxu0 0.0
        %1300 = vmatprep.subr.mxu0 0.0
        %1301 = vmatpush1.msra.mxu0 0.0
        %1302 = vmatprep.subr.mxu0 0.0
        %1303 = vmatpush1.msra.mxu0 0.0
        %1304 = vmatprep.subr.mxu0 0.0
        %1305 = vmatpush1.msra.mxu0 0.0
        %1306 = vmatprep.subr.mxu0 0.0
        %1307 = vmatpush1.msra.mxu0 0.0
        %1308 = vmatprep.subr.mxu0 0.0
        %1309 = vmatpush1.msra.mxu0 0.0
        %1310 = vmatprep.subr.mxu0 0.0
        %1311 = vmatpush1.msra.mxu0 0.0
        %1312 = vmatprep.subr.mxu0 0.0
        %1313 = vmatpush1.msra.mxu0 0.0
        %1314 = vmatprep.subr.mxu0 0.0
        %1315 = vmatpush1.msra.mxu0 0.0
        %1316 = vmatprep.subr.mxu0 0.0
        %1317 = vmatpush1.msra.mxu0 0.0
        %1318 = vmatprep.subr.mxu0 0.0
        %1319 = vmatpush1.msra.mxu0 0.0
        %1320 = vmatprep.mubr.f32.mxu0 0.0
        %1321 = vmatmul.mubr.f32.gmra.mrb[0].mxu0 %v1255
        %v1322 = vpop.f32.mrb[0].mxu0
        %v1323 = vadd.f32 0.0, %v1322
        %v1324 = vpop.f32.mrb[0].mxu0
        %1325 = vdwg.mxu0
        %v1326 = vlaneseq
        %v1327 = vshrl.u32 %v1326, 7
        %v1328 = vsub.s32 0, %v1327
        %v1329 = vrot.slane %v1323, %v1328
        %v1330 = vsub.f32 %v1241, %v1329
        %v1331 = vsub.f32 %v1246, %v1329
        %v1332 = vmul.f32 %v1330, %v1330
        %v1333 = vmul.f32 %v1331, %v1331
        %v1334 = vadd.f32 %v1332, %v1333
        %v1335 = vrot.slane %v1334, 4
        %v1336 = vadd.f32 %v1334, %v1335
        %v1337 = vrot.slane %v1336, 2
        %v1338 = vadd.f32 %v1336, %v1337
        %v1339 = vrot.slane %v1338, 1
        %v1340 = vadd.f32 %v1338, %v1339
        %1341 = vmatprep.subr.mxu0 0.0
        %1342 = vmatpush1.msra.mxu0 %v335
        %1343 = vmatprep.subr.mxu0 0.0
        %1344 = vmatpush1.msra.mxu0 %v336
        %1345 = vmatprep.subr.mxu0 0.0
        %1346 = vmatpush1.msra.mxu0 %v337
        %1347 = vmatprep.subr.mxu0 0.0
        %1348 = vmatpush1.msra.mxu0 %v338
        %1349 = vmatprep.subr.mxu0 0.0
        %1350 = vmatpush1.msra.mxu0 %v339
        %1351 = vmatprep.subr.mxu0 0.0
        %1352 = vmatpush1.msra.mxu0 %v340
        %1353 = vmatprep.subr.mxu0 0.0
        %1354 = vmatpush1.msra.mxu0 %v341
        %1355 = vmatprep.subr.mxu0 0.0
        %1356 = vmatpush1.msra.mxu0 %v342
        %1357 = vmatprep.subr.mxu0 0.0
        %1358 = vmatpush1.msra.mxu0 %v343
        %1359 = vmatprep.subr.mxu0 0.0
        %1360 = vmatpush1.msra.mxu0 %v344
        %1361 = vmatprep.subr.mxu0 0.0
        %1362 = vmatpush1.msra.mxu0 %v345
        %1363 = vmatprep.subr.mxu0 0.0
        %1364 = vmatpush1.msra.mxu0 %v346
        %1365 = vmatprep.subr.mxu0 0.0
        %1366 = vmatpush1.msra.mxu0 %v347
        %1367 = vmatprep.subr.mxu0 0.0
        %1368 = vmatpush1.msra.mxu0 %v348
        %1369 = vmatprep.subr.mxu0 0.0
        %1370 = vmatpush1.msra.mxu0 %v349
        %1371 = vmatprep.subr.mxu0 0.0
        %1372 = vmatpush1.msra.mxu0 %v350
        %1373 = vmatprep.subr.mxu0 0.0
        %1374 = vmatpush1.msra.mxu0 0.0
        %1375 = vmatprep.subr.mxu0 0.0
        %1376 = vmatpush1.msra.mxu0 0.0
        %1377 = vmatprep.subr.mxu0 0.0
        %1378 = vmatpush1.msra.mxu0 0.0
        %1379 = vmatprep.subr.mxu0 0.0
        %1380 = vmatpush1.msra.mxu0 0.0
        %1381 = vmatprep.subr.mxu0 0.0
        %1382 = vmatpush1.msra.mxu0 0.0
        %1383 = vmatprep.subr.mxu0 0.0
        %1384 = vmatpush1.msra.mxu0 0.0
        %1385 = vmatprep.subr.mxu0 0.0
        %1386 = vmatpush1.msra.mxu0 0.0
        %1387 = vmatprep.subr.mxu0 0.0
        %1388 = vmatpush1.msra.mxu0 0.0
        %1389 = vmatprep.subr.mxu0 0.0
        %1390 = vmatpush1.msra.mxu0 0.0
        %1391 = vmatprep.subr.mxu0 0.0
        %1392 = vmatpush1.msra.mxu0 0.0
        %1393 = vmatprep.subr.mxu0 0.0
        %1394 = vmatpush1.msra.mxu0 0.0
        %1395 = vmatprep.subr.mxu0 0.0
        %1396 = vmatpush1.msra.mxu0 0.0
        %1397 = vmatprep.subr.mxu0 0.0
        %1398 = vmatpush1.msra.mxu0 0.0
        %1399 = vmatprep.subr.mxu0 0.0
        %1400 = vmatpush1.msra.mxu0 0.0
        %1401 = vmatprep.subr.mxu0 0.0
        %1402 = vmatpush1.msra.mxu0 0.0
        %1403 = vmatprep.subr.mxu0 0.0
        %1404 = vmatpush1.msra.mxu0 0.0
        %1405 = vmatprep.mubr.f32.mxu0 0.0
        %1406 = vmatmul.mubr.f32.gmra.mrb[0].mxu0 %v1340
        %v1407 = vpop.f32.mrb[0].mxu0
        %v1408 = vadd.f32 1e-05, %v1407
        %v1409 = vpop.f32.mrb[0].mxu0
        %1410 = vdwg.mxu0
        %v1411 = vrsqrt.pop %v1408
        %v1412 = vlaneseq
        %v1413 = vshrl.u32 %v1412, 7
        %v1414 = vsub.s32 0, %v1413
        %v1415 = vrot.slane %v1411, %v1414
        %v1416 = vmul.f32 %v1330, %v1415
        %v1417 = vmul.f32 %v1331, %v1415
        %v1418 = vld [vmem:[#allocation2] sm:$0xff]
        %v1419 = vld [vmem:[#allocation2 + $0x8] sm:$0xff]
        %v1420 = vadd.f32 %v1416, %v1418
        %v1421 = vadd.f32 %v1417, %v1419
        %1422 = vst [vmem:[#allocation2] sm:$0xff] %v1420
        %1423 = vst [vmem:[#allocation2 + $0x8] sm:$0xff] %v1421
        %1424 = vmatprep.subr.mxu0 0.0
        %1425 = vmatpush1.msra.mxu0 %v1420
        %1426 = vmatprep.subr.mxu0 0.0
        %1427 = vmatpush1.msra.mxu0 %v1421
        %1428 = vmatprep.subr.mxu0 0.0
        %1429 = vmatpush1.msra.mxu0 0.0
        %1430 = vmatprep.subr.mxu0 0.0
        %1431 = vmatpush1.msra.mxu0 0.0
        %1432 = vmatprep.subr.mxu0 0.0
        %1433 = vmatpush1.msra.mxu0 0.0
        %1434 = vmatprep.subr.mxu0 0.0
        %1435 = vmatpush1.msra.mxu0 0.0
        %1436 = vmatprep.subr.mxu0 0.0
        %1437 = vmatpush1.msra.mxu0 0.0
        %1438 = vmatprep.subr.mxu0 0.0
        %1439 = vmatpush1.msra.mxu0 0.0
        %1440 = vmatprep.subr.mxu0 0.0
        %1441 = vmatpush1.msra.mxu0 0.0
        %1442 = vmatprep.subr.mxu0 0.0
        %1443 = vmatpush1.msra.mxu0 0.0
        %1444 = vmatprep.subr.mxu0 0.0
        %1445 = vmatpush1.msra.mxu0 0.0
        %1446 = vmatprep.subr.mxu0 0.0
        %1447 = vmatpush1.msra.mxu0 0.0
        %1448 = vmatprep.subr.mxu0 0.0
        %1449 = vmatpush1.msra.mxu0 0.0
        %1450 = vmatprep.subr.mxu0 0.0
        %1451 = vmatpush1.msra.mxu0 0.0
        %1452 = vmatprep.subr.mxu0 0.0
        %1453 = vmatpush1.msra.mxu0 0.0
        %1454 = vmatprep.subr.mxu0 0.0
        %1455 = vmatpush1.msra.mxu0 0.0
        %1456 = vmatprep.subr.mxu0 0.0
        %1457 = vmatpush1.msra.mxu0 0.0
        %1458 = vmatprep.subr.mxu0 0.0
        %1459 = vmatpush1.msra.mxu0 0.0
        %1460 = vmatprep.subr.mxu0 0.0
        %1461 = vmatpush1.msra.mxu0 0.0
        %1462 = vmatprep.subr.mxu0 0.0
        %1463 = vmatpush1.msra.mxu0 0.0
        %1464 = vmatprep.subr.mxu0 0.0
        %1465 = vmatpush1.msra.mxu0 0.0
        %1466 = vmatprep.subr.mxu0 0.0
        %1467 = vmatpush1.msra.mxu0 0.0
        %1468 = vmatprep.subr.mxu0 0.0
        %1469 = vmatpush1.msra.mxu0 0.0
        %1470 = vmatprep.subr.mxu0 0.0
        %1471 = vmatpush1.msra.mxu0 0.0
        %1472 = vmatprep.subr.mxu0 0.0
        %1473 = vmatpush1.msra.mxu0 0.0
        %1474 = vmatprep.subr.mxu0 0.0
        %1475 = vmatpush1.msra.mxu0 0.0
        %1476 = vmatprep.subr.mxu0 0.0
        %1477 = vmatpush1.msra.mxu0 0.0
        %1478 = vmatprep.subr.mxu0 0.0
        %1479 = vmatpush1.msra.mxu0 0.0
        %1480 = vmatprep.subr.mxu0 0.0
        %1481 = vmatpush1.msra.mxu0 0.0
        %1482 = vmatprep.subr.mxu0 0.0
        %1483 = vmatpush1.msra.mxu0 0.0
        %1484 = vmatprep.subr.mxu0 0.0
        %1485 = vmatpush1.msra.mxu0 0.0
        %1486 = vmatprep.subr.mxu0 0.0
        %1487 = vmatpush1.msra.mxu0 0.0
        %1488 = vmatprep.mubr.f32.mxu0 0.0
        %1489 = vmatmul.mubr.f32.gmra.mrb[0].mxu0 %v357
        %v1490 = vpop.f32.mrb[0].mxu0
        %v1491 = vadd.f32 0.0, %v1490
        %v1492 = vpop.f32.mrb[0].mxu0
        %1493 = vmatprep.mubr.f32.mxu0 0.0
        %1494 = vmatmul.mubr.f32.gmra.mrb[0].mxu0 %v360
        %v1495 = vpop.f32.mrb[0].mxu0
        %v1496 = vadd.f32 0.0, %v1495
        %v1497 = vpop.f32.mrb[0].mxu0
        %1498 = vdwg.mxu0
        %1499 = vmatprep.subr.mxu0 0.0
        %1500 = vmatpush1.msra.mxu0 %v1420
        %1501 = vmatprep.subr.mxu0 0.0
        %1502 = vmatpush1.msra.mxu0 %v1421
        %1503 = vmatprep.subr.mxu0 0.0
        %1504 = vmatpush1.msra.mxu0 0.0
        %1505 = vmatprep.subr.mxu0 0.0
        %1506 = vmatpush1.msra.mxu0 0.0
        %1507 = vmatprep.subr.mxu0 0.0
        %1508 = vmatpush1.msra.mxu0 0.0
        %1509 = vmatprep.subr.mxu0 0.0
        %1510 = vmatpush1.msra.mxu0 0.0
        %1511 = vmatprep.subr.mxu0 0.0
        %1512 = vmatpush1.msra.mxu0 0.0
        %1513 = vmatprep.subr.mxu0 0.0
        %1514 = vmatpush1.msra.mxu0 0.0
        %1515 = vmatprep.subr.mxu0 0.0
        %1516 = vmatpush1.msra.mxu0 0.0
        %1517 = vmatprep.subr.mxu0 0.0
        %1518 = vmatpush1.msra.mxu0 0.0
        %1519 = vmatprep.subr.mxu0 0.0
        %1520 = vmatpush1.msra.mxu0 0.0
        %1521 = vmatprep.subr.mxu0 0.0
        %1522 = vmatpush1.msra.mxu0 0.0
        %1523 = vmatprep.subr.mxu0 0.0
        %1524 = vmatpush1.msra.mxu0 0.0
        %1525 = vmatprep.subr.mxu0 0.0
        %1526 = vmatpush1.msra.mxu0 0.0
        %1527 = vmatprep.subr.mxu0 0.0
        %1528 = vmatpush1.msra.mxu0 0.0
        %1529 = vmatprep.subr.mxu0 0.0
        %1530 = vmatpush1.msra.mxu0 0.0
        %1531 = vmatprep.subr.mxu0 0.0
        %1532 = vmatpush1.msra.mxu0 0.0
        %1533 = vmatprep.subr.mxu0 0.0
        %1534 = vmatpush1.msra.mxu0 0.0
        %1535 = vmatprep.subr.mxu0 0.0
        %1536 = vmatpush1.msra.mxu0 0.0
        %1537 = vmatprep.subr.mxu0 0.0
        %1538 = vmatpush1.msra.mxu0 0.0
        %1539 = vmatprep.subr.mxu0 0.0
        %1540 = vmatpush1.msra.mxu0 0.0
        %1541 = vmatprep.subr.mxu0 0.0
        %1542 = vmatpush1.msra.mxu0 0.0
        %1543 = vmatprep.subr.mxu0 0.0
        %1544 = vmatpush1.msra.mxu0 0.0
        %1545 = vmatprep.subr.mxu0 0.0
        %1546 = vmatpush1.msra.mxu0 0.0
        %1547 = vmatprep.subr.mxu0 0.0
        %1548 = vmatpush1.msra.mxu0 0.0
        %1549 = vmatprep.subr.mxu0 0.0
        %1550 = vmatpush1.msra.mxu0 0.0
        %1551 = vmatprep.subr.mxu0 0.0
        %1552 = vmatpush1.msra.mxu0 0.0
        %1553 = vmatprep.subr.mxu0 0.0
        %1554 = vmatpush1.msra.mxu0 0.0
        %1555 = vmatprep.subr.mxu0 0.0
        %1556 = vmatpush1.msra.mxu0 0.0
        %1557 = vmatprep.subr.mxu0 0.0
        %1558 = vmatpush1.msra.mxu0 0.0
        %1559 = vmatprep.subr.mxu0 0.0
        %1560 = vmatpush1.msra.mxu0 0.0
        %1561 = vmatprep.subr.mxu0 0.0
        %1562 = vmatpush1.msra.mxu0 0.0
        %1563 = vmatprep.mubr.f32.mxu0 0.0
        %1564 = vmatmul.mubr.f32.gmra.mrb[0].mxu0 %v438
        %v1565 = vpop.f32.mrb[0].mxu0
        %v1566 = vadd.f32 0.0, %v1565
        %v1567 = vpop.f32.mrb[0].mxu0
        %1568 = vmatprep.mubr.f32.mxu0 0.0
        %1569 = vmatmul.mubr.f32.gmra.mrb[0].mxu0 %v441
        %v1570 = vpop.f32.mrb[0].mxu0
        %v1571 = vadd.f32 0.0, %v1570
        %v1572 = vpop.f32.mrb[0].mxu0
        %1573 = vdwg.mxu0
        %s1574 = scalar_lea.vmem [#allocation6], 384
        %v1575 = vld [vmem:[%s1574] sm:$0xff]
        %v1576 = vld [vmem:[%s1574 + $0x8] sm:$0xff]
        %v1577 = vld [vmem:[%s1574 + $0x10] sm:$0xff]
        %v1578 = vld [vmem:[%s1574 + $0x18] sm:$0xff]
        %v1579 = vld [vmem:[%s1574 + $0x20] sm:$0xff]
        %v1580 = vld [vmem:[%s1574 + $0x28] sm:$0xff]
        %v1581 = vld [vmem:[%s1574 + $0x30] sm:$0xff]
        %v1582 = vld [vmem:[%s1574 + $0x38] sm:$0xff]
        %v1583 = vld [vmem:[%s1574 + $0x40] sm:$0xff]
        %v1584 = vld [vmem:[%s1574 + $0x48] sm:$0xff]
        %v1585 = vld [vmem:[%s1574 + $0x50] sm:$0xff]
        %v1586 = vld [vmem:[%s1574 + $0x58] sm:$0xff]
        %v1587 = vld [vmem:[%s1574 + $0x60] sm:$0xff]
        %v1588 = vld [vmem:[%s1574 + $0x68] sm:$0xff]
        %v1589 = vld [vmem:[%s1574 + $0x70] sm:$0xff]
        %v1590 = vld [vmem:[%s1574 + $0x78] sm:$0xff]
        %v1591 = vld [vmem:[%s1574 + $0x80] sm:$0xff]
        %v1592 = vld [vmem:[%s1574 + $0x88] sm:$0xff]
        %v1593 = vld [vmem:[%s1574 + $0x90] sm:$0xff]
        %v1594 = vld [vmem:[%s1574 + $0x98] sm:$0xff]
        %v1595 = vld [vmem:[%s1574 + $0xa0] sm:$0xff]
        %v1596 = vld [vmem:[%s1574 + $0xa8] sm:$0xff]
        %v1597 = vld [vmem:[%s1574 + $0xb0] sm:$0xff]
        %v1598 = vld [vmem:[%s1574 + $0xb8] sm:$0xff]
        %v1599 = vld [vmem:[%s1574 + $0xc0] sm:$0xff]
        %v1600 = vld [vmem:[%s1574 + $0xc8] sm:$0xff]
        %v1601 = vld [vmem:[%s1574 + $0xd0] sm:$0xff]
        %v1602 = vld [vmem:[%s1574 + $0xd8] sm:$0xff]
        %v1603 = vld [vmem:[%s1574 + $0xe0] sm:$0xff]
        %v1604 = vld [vmem:[%s1574 + $0xe8] sm:$0xff]
        %v1605 = vld [vmem:[%s1574 + $0xf0] sm:$0xff]
        %v1606 = vld [vmem:[%s1574 + $0xf8] sm:$0xff]
        %v1607 = vld [vmem:[%s1574 + $0x100] sm:$0xff]
        %v1608 = vld [vmem:[%s1574 + $0x108] sm:$0xff]
        %v1609 = vld [vmem:[%s1574 + $0x110] sm:$0xff]
        %v1610 = vld [vmem:[%s1574 + $0x118] sm:$0xff]
        %v1611 = vld [vmem:[%s1574 + $0x120] sm:$0xff]
        %v1612 = vld [vmem:[%s1574 + $0x128] sm:$0xff]
        %v1613 = vld [vmem:[%s1574 + $0x130] sm:$0xff]
        %v1614 = vld [vmem:[%s1574 + $0x138] sm:$0xff]
        %v1615 = vld [vmem:[%s1574 + $0x140] sm:$0xff]
        %v1616 = vld [vmem:[%s1574 + $0x148] sm:$0xff]
        %v1617 = vld [vmem:[%s1574 + $0x150] sm:$0xff]
        %v1618 = vld [vmem:[%s1574 + $0x158] sm:$0xff]
        %v1619 = vld [vmem:[%s1574 + $0x160] sm:$0xff]
        %v1620 = vld [vmem:[%s1574 + $0x168] sm:$0xff]
        %v1621 = vld [vmem:[%s1574 + $0x170] sm:$0xff]
        %v1622 = vld [vmem:[%s1574 + $0x178] sm:$0xff]
        %s1623 = scalar_lea.vmem %s2, 1
        %v1624 = vld [vmem:[%s1623] sm:$0x1]
        %v1626 = vlaneseq
        %v1627 = vshrl.u32 %v1626, 7
        %v1628 = vsub.s32 0, %v1627
        %v1629 = vrot.slane %v1624, %v1628
        %1631 = vmatprep.subr.mxu0 0.0
        %1632 = vmatpush1.msra.mxu0 %v1575
        %1633 = vmatprep.subr.mxu0 0.0
        %1634 = vmatpush1.msra.mxu0 %v1576
        %1635 = vmatprep.subr.mxu0 0.0
        %1636 = vmatpush1.msra.mxu0 %v1577
        %1637 = vmatprep.subr.mxu0 0.0
        %1638 = vmatpush1.msra.mxu0 %v1578
        %1639 = vmatprep.subr.mxu0 0.0
        %1640 = vmatpush1.msra.mxu0 %v1579
        %1641 = vmatprep.subr.mxu0 0.0
        %1642 = vmatpush1.msra.mxu0 %v1580
        %1643 = vmatprep.subr.mxu0 0.0
        %1644 = vmatpush1.msra.mxu0 %v1581
        %1645 = vmatprep.subr.mxu0 0.0
        %1646 = vmatpush1.msra.mxu0 %v1582
        %1647 = vmatprep.subr.mxu0 0.0
        %1648 = vmatpush1.msra.mxu0 %v1583
        %1649 = vmatprep.subr.mxu0 0.0
        %1650 = vmatpush1.msra.mxu0 %v1584
        %1651 = vmatprep.subr.mxu0 0.0
        %1652 = vmatpush1.msra.mxu0 %v1585
        %1653 = vmatprep.subr.mxu0 0.0
        %1654 = vmatpush1.msra.mxu0 %v1586
        %1655 = vmatprep.subr.mxu0 0.0
        %1656 = vmatpush1.msra.mxu0 %v1587
        %1657 = vmatprep.subr.mxu0 0.0
        %1658 = vmatpush1.msra.mxu0 %v1588
        %1659 = vmatprep.subr.mxu0 0.0
        %1660 = vmatpush1.msra.mxu0 %v1589
        %1661 = vmatprep.subr.mxu0 0.0
        %1662 = vmatpush1.msra.mxu0 %v1590
        %1663 = vmatprep.subr.mxu0 0.0
        %1664 = vmatpush1.msra.mxu0 %v1591
        %1665 = vmatprep.subr.mxu0 0.0
        %1666 = vmatpush1.msra.mxu0 %v1592
        %1667 = vmatprep.subr.mxu0 0.0
        %1668 = vmatpush1.msra.mxu0 %v1593
        %1669 = vmatprep.subr.mxu0 0.0
        %1670 = vmatpush1.msra.mxu0 %v1594
        %1671 = vmatprep.subr.mxu0 0.0
        %1672 = vmatpush1.msra.mxu0 %v1595
        %1673 = vmatprep.subr.mxu0 0.0
        %1674 = vmatpush1.msra.mxu0 %v1596
        %1675 = vmatprep.subr.mxu0 0.0
        %1676 = vmatpush1.msra.mxu0 %v1597
        %1677 = vmatprep.subr.mxu0 0.0
        %1678 = vmatpush1.msra.mxu0 %v1598
        %1679 = vmatprep.subr.mxu0 0.0
        %1680 = vmatpush1.msra.mxu0 %v1599
        %1681 = vmatprep.subr.mxu0 0.0
        %1682 = vmatpush1.msra.mxu0 %v1600
        %1683 = vmatprep.subr.mxu0 0.0
        %1684 = vmatpush1.msra.mxu0 %v1601
        %1685 = vmatprep.subr.mxu0 0.0
        %1686 = vmatpush1.msra.mxu0 %v1602
        %1687 = vmatprep.subr.mxu0 0.0
        %1688 = vmatpush1.msra.mxu0 %v1603
        %1689 = vmatprep.subr.mxu0 0.0
        %1690 = vmatpush1.msra.mxu0 %v1604
        %1691 = vmatprep.subr.mxu0 0.0
        %1692 = vmatpush1.msra.mxu0 %v1605
        %1693 = vmatprep.subr.mxu0 0.0
        %1694 = vmatpush1.msra.mxu0 %v1606
        %1695 = vmatprep.mubr.f32.mxu0 %v1420
        %1696 = vmatmul.mubr.f32.gmra.mrb[0].mxu0 %v1491
        %v1697 = vpop.f32.mrb[0].mxu0
        %v1698 = vadd.f32 %v1629, %v1697
        %v1699 = vpop.f32.mrb[0].mxu0
        %1700 = vmatprep.mubr.f32.mxu0 %v1421
        %1701 = vmatmul.mubr.f32.gmra.mrb[0].mxu0 %v1496
        %v1702 = vpop.f32.mrb[0].mxu0
        %v1703 = vadd.f32 %v1629, %v1702
        %v1704 = vpop.f32.mrb[0].mxu0
        %1705 = vdwg.mxu0
        %1706 = vmatprep.subr.mxu0 0.0
        %1707 = vmatpush1.msra.mxu0 %v1607
        %1708 = vmatprep.subr.mxu0 0.0
        %1709 = vmatpush1.msra.mxu0 %v1608
        %1710 = vmatprep.subr.mxu0 0.0
        %1711 = vmatpush1.msra.mxu0 %v1609
        %1712 = vmatprep.subr.mxu0 0.0
        %1713 = vmatpush1.msra.mxu0 %v1610
        %1714 = vmatprep.subr.mxu0 0.0
        %1715 = vmatpush1.msra.mxu0 %v1611
        %1716 = vmatprep.subr.mxu0 0.0
        %1717 = vmatpush1.msra.mxu0 %v1612
        %1718 = vmatprep.subr.mxu0 0.0
        %1719 = vmatpush1.msra.mxu0 %v1613
        %1720 = vmatprep.subr.mxu0 0.0
        %1721 = vmatpush1.msra.mxu0 %v1614
        %1722 = vmatprep.subr.mxu0 0.0
        %1723 = vmatpush1.msra.mxu0 %v1615
        %1724 = vmatprep.subr.mxu0 0.0
        %1725 = vmatpush1.msra.mxu0 %v1616
        %1726 = vmatprep.subr.mxu0 0.0
        %1727 = vmatpush1.msra.mxu0 %v1617
        %1728 = vmatprep.subr.mxu0 0.0
        %1729 = vmatpush1.msra.mxu0 %v1618
        %1730 = vmatprep.subr.mxu0 0.0
        %1731 = vmatpush1.msra.mxu0 %v1619
        %1732 = vmatprep.subr.mxu0 0.0
        %1733 = vmatpush1.msra.mxu0 %v1620
        %1734 = vmatprep.subr.mxu0 0.0
        %1735 = vmatpush1.msra.mxu0 %v1621
        %1736 = vmatprep.subr.mxu0 0.0
        %1737 = vmatpush1.msra.mxu0 %v1622
        %1738 = vmatprep.subr.mxu0 0.0
        %1739 = vmatpush1.msra.mxu0 0.0
        %1740 = vmatprep.subr.mxu0 0.0
        %1741 = vmatpush1.msra.mxu0 0.0
        %1742 = vmatprep.subr.mxu0 0.0
        %1743 = vmatpush1.msra.mxu0 0.0
        %1744 = vmatprep.subr.mxu0 0.0
        %1745 = vmatpush1.msra.mxu0 0.0
        %1746 = vmatprep.subr.mxu0 0.0
        %1747 = vmatpush1.msra.mxu0 0.0
        %1748 = vmatprep.subr.mxu0 0.0
        %1749 = vmatpush1.msra.mxu0 0.0
        %1750 = vmatprep.subr.mxu0 0.0
        %1751 = vmatpush1.msra.mxu0 0.0
        %1752 = vmatprep.subr.mxu0 0.0
        %1753 = vmatpush1.msra.mxu0 0.0
        %1754 = vmatprep.subr.mxu0 0.0
        %1755 = vmatpush1.msra.mxu0 0.0
        %1756 = vmatprep.subr.mxu0 0.0
        %1757 = vmatpush1.msra.mxu0 0.0
        %1758 = vmatprep.subr.mxu0 0.0
        %1759 = vmatpush1.msra.mxu0 0.0
        %1760 = vmatprep.subr.mxu0 0.0
        %1761 = vmatpush1.msra.mxu0 0.0
        %1762 = vmatprep.subr.mxu0 0.0
        %1763 = vmatpush1.msra.mxu0 0.0
        %1764 = vmatprep.subr.mxu0 0.0
        %1765 = vmatpush1.msra.mxu0 0.0
        %1766 = vmatprep.subr.mxu0 0.0
        %1767 = vmatpush1.msra.mxu0 0.0
        %1768 = vmatprep.subr.mxu0 0.0
        %1769 = vmatpush1.msra.mxu0 0.0
        %1770 = vmatprep.mubr.f32.mxu0 0.0
        %1771 = vmatmul.mubr.f32.gmra.mrb[0].mxu0 %v1566
        %v1772 = vpop.f32.mrb[0].mxu0
        %v1773 = vadd.f32 %v1698, %v1772
        %v1774 = vpop.f32.mrb[0].mxu0
        %1775 = vmatprep.mubr.f32.mxu0 0.0
        %1776 = vmatmul.mubr.f32.gmra.mrb[0].mxu0 %v1571
        %v1777 = vpop.f32.mrb[0].mxu0
        %v1778 = vadd.f32 %v1703, %v1777
        %v1779 = vpop.f32.mrb[0].mxu0
        %1780 = vdwg.mxu0
        %v1781 = vadd.f32 %v1773, %v1778
        %v1782 = vrot.slane %v1781, 4
        %v1783 = vadd.f32 %v1781, %v1782
        %v1784 = vrot.slane %v1783, 2
        %v1785 = vadd.f32 %v1783, %v1784
        %v1786 = vrot.slane %v1785, 1
        %v1787 = vadd.f32 %v1785, %v1786
        %1788 = vmatprep.subr.mxu0 0.0
        %1789 = vmatpush1.msra.mxu0 %v335
        %1790 = vmatprep.subr.mxu0 0.0
        %1791 = vmatpush1.msra.mxu0 %v336
        %1792 = vmatprep.subr.mxu0 0.0
        %1793 = vmatpush1.msra.mxu0 %v337
        %1794 = vmatprep.subr.mxu0 0.0
        %1795 = vmatpush1.msra.mxu0 %v338
        %1796 = vmatprep.subr.mxu0 0.0
        %1797 = vmatpush1.msra.mxu0 %v339
        %1798 = vmatprep.subr.mxu0 0.0
        %1799 = vmatpush1.msra.mxu0 %v340
        %1800 = vmatprep.subr.mxu0 0.0
        %1801 = vmatpush1.msra.mxu0 %v341
        %1802 = vmatprep.subr.mxu0 0.0
        %1803 = vmatpush1.msra.mxu0 %v342
        %1804 = vmatprep.subr.mxu0 0.0
        %1805 = vmatpush1.msra.mxu0 %v343
        %1806 = vmatprep.subr.mxu0 0.0
        %1807 = vmatpush1.msra.mxu0 %v344
        %1808 = vmatprep.subr.mxu0 0.0
        %1809 = vmatpush1.msra.mxu0 %v345
        %1810 = vmatprep.subr.mxu0 0.0
        %1811 = vmatpush1.msra.mxu0 %v346
        %1812 = vmatprep.subr.mxu0 0.0
        %1813 = vmatpush1.msra.mxu0 %v347
        %1814 = vmatprep.subr.mxu0 0.0
        %1815 = vmatpush1.msra.mxu0 %v348
        %1816 = vmatprep.subr.mxu0 0.0
        %1817 = vmatpush1.msra.mxu0 %v349
        %1818 = vmatprep.subr.mxu0 0.0
        %1819 = vmatpush1.msra.mxu0 %v350
        %1820 = vmatprep.subr.mxu0 0.0
        %1821 = vmatpush1.msra.mxu0 0.0
        %1822 = vmatprep.subr.mxu0 0.0
        %1823 = vmatpush1.msra.mxu0 0.0
        %1824 = vmatprep.subr.mxu0 0.0
        %1825 = vmatpush1.msra.mxu0 0.0
        %1826 = vmatprep.subr.mxu0 0.0
        %1827 = vmatpush1.msra.mxu0 0.0
        %1828 = vmatprep.subr.mxu0 0.0
        %1829 = vmatpush1.msra.mxu0 0.0
        %1830 = vmatprep.subr.mxu0 0.0
        %1831 = vmatpush1.msra.mxu0 0.0
        %1832 = vmatprep.subr.mxu0 0.0
        %1833 = vmatpush1.msra.mxu0 0.0
        %1834 = vmatprep.subr.mxu0 0.0
        %1835 = vmatpush1.msra.mxu0 0.0
        %1836 = vmatprep.subr.mxu0 0.0
        %1837 = vmatpush1.msra.mxu0 0.0
        %1838 = vmatprep.subr.mxu0 0.0
        %1839 = vmatpush1.msra.mxu0 0.0
        %1840 = vmatprep.subr.mxu0 0.0
        %1841 = vmatpush1.msra.mxu0 0.0
        %1842 = vmatprep.subr.mxu0 0.0
        %1843 = vmatpush1.msra.mxu0 0.0
        %1844 = vmatprep.subr.mxu0 0.0
        %1845 = vmatpush1.msra.mxu0 0.0
        %1846 = vmatprep.subr.mxu0 0.0
        %1847 = vmatpush1.msra.mxu0 0.0
        %1848 = vmatprep.subr.mxu0 0.0
        %1849 = vmatpush1.msra.mxu0 0.0
        %1850 = vmatprep.subr.mxu0 0.0
        %1851 = vmatpush1.msra.mxu0 0.0
        %1852 = vmatprep.mubr.f32.mxu0 0.0
        %1853 = vmatmul.mubr.f32.gmra.mrb[0].mxu0 %v1787
        %v1854 = vpop.f32.mrb[0].mxu0
        %v1855 = vadd.f32 0.0, %v1854
        %v1856 = vpop.f32.mrb[0].mxu0
        %1857 = vdwg.mxu0
        %v1858 = vlaneseq
        %v1859 = vshrl.u32 %v1858, 7
        %v1860 = vsub.s32 0, %v1859
        %v1861 = vrot.slane %v1855, %v1860
        %v1862 = vsub.f32 %v1773, %v1861
        %v1863 = vsub.f32 %v1778, %v1861
        %v1864 = vmul.f32 %v1862, %v1862
        %v1865 = vmul.f32 %v1863, %v1863
        %v1866 = vadd.f32 %v1864, %v1865
        %v1867 = vrot.slane %v1866, 4
        %v1868 = vadd.f32 %v1866, %v1867
        %v1869 = vrot.slane %v1868, 2
        %v1870 = vadd.f32 %v1868, %v1869
        %v1871 = vrot.slane %v1870, 1
        %v1872 = vadd.f32 %v1870, %v1871
        %1873 = vmatprep.subr.mxu0 0.0
        %1874 = vmatpush1.msra.mxu0 %v335
        %1875 = vmatprep.subr.mxu0 0.0
        %1876 = vmatpush1.msra.mxu0 %v336
        %1877 = vmatprep.subr.mxu0 0.0
        %1878 = vmatpush1.msra.mxu0 %v337
        %1879 = vmatprep.subr.mxu0 0.0
        %1880 = vmatpush1.msra.mxu0 %v338
        %1881 = vmatprep.subr.mxu0 0.0
        %1882 = vmatpush1.msra.mxu0 %v339
        %1883 = vmatprep.subr.mxu0 0.0
        %1884 = vmatpush1.msra.mxu0 %v340
        %1885 = vmatprep.subr.mxu0 0.0
        %1886 = vmatpush1.msra.mxu0 %v341
        %1887 = vmatprep.subr.mxu0 0.0
        %1888 = vmatpush1.msra.mxu0 %v342
        %1889 = vmatprep.subr.mxu0 0.0
        %1890 = vmatpush1.msra.mxu0 %v343
        %1891 = vmatprep.subr.mxu0 0.0
        %1892 = vmatpush1.msra.mxu0 %v344
        %1893 = vmatprep.subr.mxu0 0.0
        %1894 = vmatpush1.msra.mxu0 %v345
        %1895 = vmatprep.subr.mxu0 0.0
        %1896 = vmatpush1.msra.mxu0 %v346
        %1897 = vmatprep.subr.mxu0 0.0
        %1898 = vmatpush1.msra.mxu0 %v347
        %1899 = vmatprep.subr.mxu0 0.0
        %1900 = vmatpush1.msra.mxu0 %v348
        %1901 = vmatprep.subr.mxu0 0.0
        %1902 = vmatpush1.msra.mxu0 %v349
        %1903 = vmatprep.subr.mxu0 0.0
        %1904 = vmatpush1.msra.mxu0 %v350
        %1905 = vmatprep.subr.mxu0 0.0
        %1906 = vmatpush1.msra.mxu0 0.0
        %1907 = vmatprep.subr.mxu0 0.0
        %1908 = vmatpush1.msra.mxu0 0.0
        %1909 = vmatprep.subr.mxu0 0.0
        %1910 = vmatpush1.msra.mxu0 0.0
        %1911 = vmatprep.subr.mxu0 0.0
        %1912 = vmatpush1.msra.mxu0 0.0
        %1913 = vmatprep.subr.mxu0 0.0
        %1914 = vmatpush1.msra.mxu0 0.0
        %1915 = vmatprep.subr.mxu0 0.0
        %1916 = vmatpush1.msra.mxu0 0.0
        %1917 = vmatprep.subr.mxu0 0.0
        %1918 = vmatpush1.msra.mxu0 0.0
        %1919 = vmatprep.subr.mxu0 0.0
        %1920 = vmatpush1.msra.mxu0 0.0
        %1921 = vmatprep.subr.mxu0 0.0
        %1922 = vmatpush1.msra.mxu0 0.0
        %1923 = vmatprep.subr.mxu0 0.0
        %1924 = vmatpush1.msra.mxu0 0.0
        %1925 = vmatprep.subr.mxu0 0.0
        %1926 = vmatpush1.msra.mxu0 0.0
        %1927 = vmatprep.subr.mxu0 0.0
        %1928 = vmatpush1.msra.mxu0 0.0
        %1929 = vmatprep.subr.mxu0 0.0
        %1930 = vmatpush1.msra.mxu0 0.0
        %1931 = vmatprep.subr.mxu0 0.0
        %1932 = vmatpush1.msra.mxu0 0.0
        %1933 = vmatprep.subr.mxu0 0.0
        %1934 = vmatpush1.msra.mxu0 0.0
        %1935 = vmatprep.subr.mxu0 0.0
        %1936 = vmatpush1.msra.mxu0 0.0
        %1937 = vmatprep.mubr.f32.mxu0 0.0
        %1938 = vmatmul.mubr.f32.gmra.mrb[0].mxu0 %v1872
        %v1939 = vpop.f32.mrb[0].mxu0
        %v1940 = vadd.f32 1e-05, %v1939
        %v1941 = vpop.f32.mrb[0].mxu0
        %1942 = vdwg.mxu0
        %v1943 = vrsqrt.pop %v1940
        %v1944 = vlaneseq
        %v1945 = vshrl.u32 %v1944, 7
        %v1946 = vsub.s32 0, %v1945
        %v1947 = vrot.slane %v1943, %v1946
        %v1948 = vmul.f32 %v1862, %v1947
        %v1949 = vmul.f32 %v1863, %v1947
        %v1950 = vmax.f32 %v1948, 0.0
        %v1951 = vmax.f32 %v1949, 0.0
        %1952 = vmatprep.subr.mxu0 0.0
        %1953 = vmatpush1.msra.mxu0 %v1950
        %1954 = vmatprep.subr.mxu0 0.0
        %1955 = vmatpush1.msra.mxu0 %v1951
        %1956 = vmatprep.subr.mxu0 0.0
        %1957 = vmatpush1.msra.mxu0 0.0
        %1958 = vmatprep.subr.mxu0 0.0
        %1959 = vmatpush1.msra.mxu0 0.0
        %1960 = vmatprep.subr.mxu0 0.0
        %1961 = vmatpush1.msra.mxu0 0.0
        %1962 = vmatprep.subr.mxu0 0.0
        %1963 = vmatpush1.msra.mxu0 0.0
        %1964 = vmatprep.subr.mxu0 0.0
        %1965 = vmatpush1.msra.mxu0 0.0
        %1966 = vmatprep.subr.mxu0 0.0
        %1967 = vmatpush1.msra.mxu0 0.0
        %1968 = vmatprep.subr.mxu0 0.0
        %1969 = vmatpush1.msra.mxu0 0.0
        %1970 = vmatprep.subr.mxu0 0.0
        %1971 = vmatpush1.msra.mxu0 0.0
        %1972 = vmatprep.subr.mxu0 0.0
        %1973 = vmatpush1.msra.mxu0 0.0
        %1974 = vmatprep.subr.mxu0 0.0
        %1975 = vmatpush1.msra.mxu0 0.0
        %1976 = vmatprep.subr.mxu0 0.0
        %1977 = vmatpush1.msra.mxu0 0.0
        %1978 = vmatprep.subr.mxu0 0.0
        %1979 = vmatpush1.msra.mxu0 0.0
        %1980 = vmatprep.subr.mxu0 0.0
        %1981 = vmatpush1.msra.mxu0 0.0
        %1982 = vmatprep.subr.mxu0 0.0
        %1983 = vmatpush1.msra.mxu0 0.0
        %1984 = vmatprep.subr.mxu0 0.0
        %1985 = vmatpush1.msra.mxu0 0.0
        %1986 = vmatprep.subr.mxu0 0.0
        %1987 = vmatpush1.msra.mxu0 0.0
        %1988 = vmatprep.subr.mxu0 0.0
        %1989 = vmatpush1.msra.mxu0 0.0
        %1990 = vmatprep.subr.mxu0 0.0
        %1991 = vmatpush1.msra.mxu0 0.0
        %1992 = vmatprep.subr.mxu0 0.0
        %1993 = vmatpush1.msra.mxu0 0.0
        %1994 = vmatprep.subr.mxu0 0.0
        %1995 = vmatpush1.msra.mxu0 0.0
        %1996 = vmatprep.subr.mxu0 0.0
        %1997 = vmatpush1.msra.mxu0 0.0
        %1998 = vmatprep.subr.mxu0 0.0
        %1999 = vmatpush1.msra.mxu0 0.0
        %2000 = vmatprep.subr.mxu0 0.0
        %2001 = vmatpush1.msra.mxu0 0.0
        %2002 = vmatprep.subr.mxu0 0.0
        %2003 = vmatpush1.msra.mxu0 0.0
        %2004 = vmatprep.subr.mxu0 0.0
        %2005 = vmatpush1.msra.mxu0 0.0
        %2006 = vmatprep.subr.mxu0 0.0
        %2007 = vmatpush1.msra.mxu0 0.0
        %2008 = vmatprep.subr.mxu0 0.0
        %2009 = vmatpush1.msra.mxu0 0.0
        %2010 = vmatprep.subr.mxu0 0.0
        %2011 = vmatpush1.msra.mxu0 0.0
        %2012 = vmatprep.subr.mxu0 0.0
        %2013 = vmatpush1.msra.mxu0 0.0
        %2014 = vmatprep.subr.mxu0 0.0
        %2015 = vmatpush1.msra.mxu0 0.0
        %2016 = vmatprep.mubr.f32.mxu0 0.0
        %2017 = vmatmul.mubr.f32.gmra.mrb[0].mxu0 %v357
        %v2018 = vpop.f32.mrb[0].mxu0
        %v2019 = vadd.f32 0.0, %v2018
        %v2020 = vpop.f32.mrb[0].mxu0
        %2021 = vmatprep.mubr.f32.mxu0 0.0
        %2022 = vmatmul.mubr.f32.gmra.mrb[0].mxu0 %v360
        %v2023 = vpop.f32.mrb[0].mxu0
        %v2024 = vadd.f32 0.0, %v2023
        %v2025 = vpop.f32.mrb[0].mxu0
        %2026 = vdwg.mxu0
        %2027 = vmatprep.subr.mxu0 0.0
        %2028 = vmatpush1.msra.mxu0 %v1950
        %2029 = vmatprep.subr.mxu0 0.0
        %2030 = vmatpush1.msra.mxu0 %v1951
        %2031 = vmatprep.subr.mxu0 0.0
        %2032 = vmatpush1.msra.mxu0 0.0
        %2033 = vmatprep.subr.mxu0 0.0
        %2034 = vmatpush1.msra.mxu0 0.0
        %2035 = vmatprep.subr.mxu0 0.0
        %2036 = vmatpush1.msra.mxu0 0.0
        %2037 = vmatprep.subr.mxu0 0.0
        %2038 = vmatpush1.msra.mxu0 0.0
        %2039 = vmatprep.subr.mxu0 0.0
        %2040 = vmatpush1.msra.mxu0 0.0
        %2041 = vmatprep.subr.mxu0 0.0
        %2042 = vmatpush1.msra.mxu0 0.0
        %2043 = vmatprep.subr.mxu0 0.0
        %2044 = vmatpush1.msra.mxu0 0.0
        %2045 = vmatprep.subr.mxu0 0.0
        %2046 = vmatpush1.msra.mxu0 0.0
        %2047 = vmatprep.subr.mxu0 0.0
        %2048 = vmatpush1.msra.mxu0 0.0
        %2049 = vmatprep.subr.mxu0 0.0
        %2050 = vmatpush1.msra.mxu0 0.0
        %2051 = vmatprep.subr.mxu0 0.0
        %2052 = vmatpush1.msra.mxu0 0.0
        %2053 = vmatprep.subr.mxu0 0.0
        %2054 = vmatpush1.msra.mxu0 0.0
        %2055 = vmatprep.subr.mxu0 0.0
        %2056 = vmatpush1.msra.mxu0 0.0
        %2057 = vmatprep.subr.mxu0 0.0
        %2058 = vmatpush1.msra.mxu0 0.0
        %2059 = vmatprep.subr.mxu0 0.0
        %2060 = vmatpush1.msra.mxu0 0.0
        %2061 = vmatprep.subr.mxu0 0.0
        %2062 = vmatpush1.msra.mxu0 0.0
        %2063 = vmatprep.subr.mxu0 0.0
        %2064 = vmatpush1.msra.mxu0 0.0
        %2065 = vmatprep.subr.mxu0 0.0
        %2066 = vmatpush1.msra.mxu0 0.0
        %2067 = vmatprep.subr.mxu0 0.0
        %2068 = vmatpush1.msra.mxu0 0.0
        %2069 = vmatprep.subr.mxu0 0.0
        %2070 = vmatpush1.msra.mxu0 0.0
        %2071 = vmatprep.subr.mxu0 0.0
        %2072 = vmatpush1.msra.mxu0 0.0
        %2073 = vmatprep.subr.mxu0 0.0
        %2074 = vmatpush1.msra.mxu0 0.0
        %2075 = vmatprep.subr.mxu0 0.0
        %2076 = vmatpush1.msra.mxu0 0.0
        %2077 = vmatprep.subr.mxu0 0.0
        %2078 = vmatpush1.msra.mxu0 0.0
        %2079 = vmatprep.subr.mxu0 0.0
        %2080 = vmatpush1.msra.mxu0 0.0
        %2081 = vmatprep.subr.mxu0 0.0
        %2082 = vmatpush1.msra.mxu0 0.0
        %2083 = vmatprep.subr.mxu0 0.0
        %2084 = vmatpush1.msra.mxu0 0.0
        %2085 = vmatprep.subr.mxu0 0.0
        %2086 = vmatpush1.msra.mxu0 0.0
        %2087 = vmatprep.subr.mxu0 0.0
        %2088 = vmatpush1.msra.mxu0 0.0
        %2089 = vmatprep.subr.mxu0 0.0
        %2090 = vmatpush1.msra.mxu0 0.0
        %2091 = vmatprep.mubr.f32.mxu0 0.0
        %2092 = vmatmul.mubr.f32.gmra.mrb[0].mxu0 %v438
        %v2093 = vpop.f32.mrb[0].mxu0
        %v2094 = vadd.f32 0.0, %v2093
        %v2095 = vpop.f32.mrb[0].mxu0
        %2096 = vmatprep.mubr.f32.mxu0 0.0
        %2097 = vmatmul.mubr.f32.gmra.mrb[0].mxu0 %v441
        %v2098 = vpop.f32.mrb[0].mxu0
        %v2099 = vadd.f32 0.0, %v2098
        %v2100 = vpop.f32.mrb[0].mxu0
        %2101 = vdwg.mxu0
        %s2102 = scalar_lea.vmem [#allocation8], 384
        %v2103 = vld [vmem:[%s2102] sm:$0xff]
        %v2104 = vld [vmem:[%s2102 + $0x8] sm:$0xff]
        %v2105 = vld [vmem:[%s2102 + $0x10] sm:$0xff]
        %v2106 = vld [vmem:[%s2102 + $0x18] sm:$0xff]
        %v2107 = vld [vmem:[%s2102 + $0x20] sm:$0xff]
        %v2108 = vld [vmem:[%s2102 + $0x28] sm:$0xff]
        %v2109 = vld [vmem:[%s2102 + $0x30] sm:$0xff]
        %v2110 = vld [vmem:[%s2102 + $0x38] sm:$0xff]
        %v2111 = vld [vmem:[%s2102 + $0x40] sm:$0xff]
        %v2112 = vld [vmem:[%s2102 + $0x48] sm:$0xff]
        %v2113 = vld [vmem:[%s2102 + $0x50] sm:$0xff]
        %v2114 = vld [vmem:[%s2102 + $0x58] sm:$0xff]
        %v2115 = vld [vmem:[%s2102 + $0x60] sm:$0xff]
        %v2116 = vld [vmem:[%s2102 + $0x68] sm:$0xff]
        %v2117 = vld [vmem:[%s2102 + $0x70] sm:$0xff]
        %v2118 = vld [vmem:[%s2102 + $0x78] sm:$0xff]
        %v2119 = vld [vmem:[%s2102 + $0x80] sm:$0xff]
        %v2120 = vld [vmem:[%s2102 + $0x88] sm:$0xff]
        %v2121 = vld [vmem:[%s2102 + $0x90] sm:$0xff]
        %v2122 = vld [vmem:[%s2102 + $0x98] sm:$0xff]
        %v2123 = vld [vmem:[%s2102 + $0xa0] sm:$0xff]
        %v2124 = vld [vmem:[%s2102 + $0xa8] sm:$0xff]
        %v2125 = vld [vmem:[%s2102 + $0xb0] sm:$0xff]
        %v2126 = vld [vmem:[%s2102 + $0xb8] sm:$0xff]
        %v2127 = vld [vmem:[%s2102 + $0xc0] sm:$0xff]
        %v2128 = vld [vmem:[%s2102 + $0xc8] sm:$0xff]
        %v2129 = vld [vmem:[%s2102 + $0xd0] sm:$0xff]
        %v2130 = vld [vmem:[%s2102 + $0xd8] sm:$0xff]
        %v2131 = vld [vmem:[%s2102 + $0xe0] sm:$0xff]
        %v2132 = vld [vmem:[%s2102 + $0xe8] sm:$0xff]
        %v2133 = vld [vmem:[%s2102 + $0xf0] sm:$0xff]
        %v2134 = vld [vmem:[%s2102 + $0xf8] sm:$0xff]
        %v2135 = vld [vmem:[%s2102 + $0x100] sm:$0xff]
        %v2136 = vld [vmem:[%s2102 + $0x108] sm:$0xff]
        %v2137 = vld [vmem:[%s2102 + $0x110] sm:$0xff]
        %v2138 = vld [vmem:[%s2102 + $0x118] sm:$0xff]
        %v2139 = vld [vmem:[%s2102 + $0x120] sm:$0xff]
        %v2140 = vld [vmem:[%s2102 + $0x128] sm:$0xff]
        %v2141 = vld [vmem:[%s2102 + $0x130] sm:$0xff]
        %v2142 = vld [vmem:[%s2102 + $0x138] sm:$0xff]
        %v2143 = vld [vmem:[%s2102 + $0x140] sm:$0xff]
        %v2144 = vld [vmem:[%s2102 + $0x148] sm:$0xff]
        %v2145 = vld [vmem:[%s2102 + $0x150] sm:$0xff]
        %v2146 = vld [vmem:[%s2102 + $0x158] sm:$0xff]
        %v2147 = vld [vmem:[%s2102 + $0x160] sm:$0xff]
        %v2148 = vld [vmem:[%s2102 + $0x168] sm:$0xff]
        %v2149 = vld [vmem:[%s2102 + $0x170] sm:$0xff]
        %v2150 = vld [vmem:[%s2102 + $0x178] sm:$0xff]
        %s2151 = scalar_lea.vmem %s4, 1
        %v2152 = vld [vmem:[%s2151] sm:$0x1]
        %v2154 = vlaneseq
        %v2155 = vshrl.u32 %v2154, 7
        %v2156 = vsub.s32 0, %v2155
        %v2157 = vrot.slane %v2152, %v2156
        %2159 = vmatprep.subr.mxu0 0.0
        %2160 = vmatpush1.msra.mxu0 %v2103
        %2161 = vmatprep.subr.mxu0 0.0
        %2162 = vmatpush1.msra.mxu0 %v2104
        %2163 = vmatprep.subr.mxu0 0.0
        %2164 = vmatpush1.msra.mxu0 %v2105
        %2165 = vmatprep.subr.mxu0 0.0
        %2166 = vmatpush1.msra.mxu0 %v2106
        %2167 = vmatprep.subr.mxu0 0.0
        %2168 = vmatpush1.msra.mxu0 %v2107
        %2169 = vmatprep.subr.mxu0 0.0
        %2170 = vmatpush1.msra.mxu0 %v2108
        %2171 = vmatprep.subr.mxu0 0.0
        %2172 = vmatpush1.msra.mxu0 %v2109
        %2173 = vmatprep.subr.mxu0 0.0
        %2174 = vmatpush1.msra.mxu0 %v2110
        %2175 = vmatprep.subr.mxu0 0.0
        %2176 = vmatpush1.msra.mxu0 %v2111
        %2177 = vmatprep.subr.mxu0 0.0
        %2178 = vmatpush1.msra.mxu0 %v2112
        %2179 = vmatprep.subr.mxu0 0.0
        %2180 = vmatpush1.msra.mxu0 %v2113
        %2181 = vmatprep.subr.mxu0 0.0
        %2182 = vmatpush1.msra.mxu0 %v2114
        %2183 = vmatprep.subr.mxu0 0.0
        %2184 = vmatpush1.msra.mxu0 %v2115
        %2185 = vmatprep.subr.mxu0 0.0
        %2186 = vmatpush1.msra.mxu0 %v2116
        %2187 = vmatprep.subr.mxu0 0.0
        %2188 = vmatpush1.msra.mxu0 %v2117
        %2189 = vmatprep.subr.mxu0 0.0
        %2190 = vmatpush1.msra.mxu0 %v2118
        %2191 = vmatprep.subr.mxu0 0.0
        %2192 = vmatpush1.msra.mxu0 %v2119
        %2193 = vmatprep.subr.mxu0 0.0
        %2194 = vmatpush1.msra.mxu0 %v2120
        %2195 = vmatprep.subr.mxu0 0.0
        %2196 = vmatpush1.msra.mxu0 %v2121
        %2197 = vmatprep.subr.mxu0 0.0
        %2198 = vmatpush1.msra.mxu0 %v2122
        %2199 = vmatprep.subr.mxu0 0.0
        %2200 = vmatpush1.msra.mxu0 %v2123
        %2201 = vmatprep.subr.mxu0 0.0
        %2202 = vmatpush1.msra.mxu0 %v2124
        %2203 = vmatprep.subr.mxu0 0.0
        %2204 = vmatpush1.msra.mxu0 %v2125
        %2205 = vmatprep.subr.mxu0 0.0
        %2206 = vmatpush1.msra.mxu0 %v2126
        %2207 = vmatprep.subr.mxu0 0.0
        %2208 = vmatpush1.msra.mxu0 %v2127
        %2209 = vmatprep.subr.mxu0 0.0
        %2210 = vmatpush1.msra.mxu0 %v2128
        %2211 = vmatprep.subr.mxu0 0.0
        %2212 = vmatpush1.msra.mxu0 %v2129
        %2213 = vmatprep.subr.mxu0 0.0
        %2214 = vmatpush1.msra.mxu0 %v2130
        %2215 = vmatprep.subr.mxu0 0.0
        %2216 = vmatpush1.msra.mxu0 %v2131
        %2217 = vmatprep.subr.mxu0 0.0
        %2218 = vmatpush1.msra.mxu0 %v2132
        %2219 = vmatprep.subr.mxu0 0.0
        %2220 = vmatpush1.msra.mxu0 %v2133
        %2221 = vmatprep.subr.mxu0 0.0
        %2222 = vmatpush1.msra.mxu0 %v2134
        %2223 = vmatprep.mubr.f32.mxu0 %v1950
        %2224 = vmatmul.mubr.f32.gmra.mrb[0].mxu0 %v2019
        %v2225 = vpop.f32.mrb[0].mxu0
        %v2226 = vadd.f32 %v2157, %v2225
        %v2227 = vpop.f32.mrb[0].mxu0
        %2228 = vmatprep.mubr.f32.mxu0 %v1951
        %2229 = vmatmul.mubr.f32.gmra.mrb[0].mxu0 %v2024
        %v2230 = vpop.f32.mrb[0].mxu0
        %v2231 = vadd.f32 %v2157, %v2230
        %v2232 = vpop.f32.mrb[0].mxu0
        %2233 = vdwg.mxu0
        %2234 = vmatprep.subr.mxu0 0.0
        %2235 = vmatpush1.msra.mxu0 %v2135
        %2236 = vmatprep.subr.mxu0 0.0
        %2237 = vmatpush1.msra.mxu0 %v2136
        %2238 = vmatprep.subr.mxu0 0.0
        %2239 = vmatpush1.msra.mxu0 %v2137
        %2240 = vmatprep.subr.mxu0 0.0
        %2241 = vmatpush1.msra.mxu0 %v2138
        %2242 = vmatprep.subr.mxu0 0.0
        %2243 = vmatpush1.msra.mxu0 %v2139
        %2244 = vmatprep.subr.mxu0 0.0
        %2245 = vmatpush1.msra.mxu0 %v2140
        %2246 = vmatprep.subr.mxu0 0.0
        %2247 = vmatpush1.msra.mxu0 %v2141
        %2248 = vmatprep.subr.mxu0 0.0
        %2249 = vmatpush1.msra.mxu0 %v2142
        %2250 = vmatprep.subr.mxu0 0.0
        %2251 = vmatpush1.msra.mxu0 %v2143
        %2252 = vmatprep.subr.mxu0 0.0
        %2253 = vmatpush1.msra.mxu0 %v2144
        %2254 = vmatprep.subr.mxu0 0.0
        %2255 = vmatpush1.msra.mxu0 %v2145
        %2256 = vmatprep.subr.mxu0 0.0
        %2257 = vmatpush1.msra.mxu0 %v2146
        %2258 = vmatprep.subr.mxu0 0.0
        %2259 = vmatpush1.msra.mxu0 %v2147
        %2260 = vmatprep.subr.mxu0 0.0
        %2261 = vmatpush1.msra.mxu0 %v2148
        %2262 = vmatprep.subr.mxu0 0.0
        %2263 = vmatpush1.msra.mxu0 %v2149
        %2264 = vmatprep.subr.mxu0 0.0
        %2265 = vmatpush1.msra.mxu0 %v2150
        %2266 = vmatprep.subr.mxu0 0.0
        %2267 = vmatpush1.msra.mxu0 0.0
        %2268 = vmatprep.subr.mxu0 0.0
        %2269 = vmatpush1.msra.mxu0 0.0
        %2270 = vmatprep.subr.mxu0 0.0
        %2271 = vmatpush1.msra.mxu0 0.0
        %2272 = vmatprep.subr.mxu0 0.0
        %2273 = vmatpush1.msra.mxu0 0.0
        %2274 = vmatprep.subr.mxu0 0.0
        %2275 = vmatpush1.msra.mxu0 0.0
        %2276 = vmatprep.subr.mxu0 0.0
        %2277 = vmatpush1.msra.mxu0 0.0
        %2278 = vmatprep.subr.mxu0 0.0
        %2279 = vmatpush1.msra.mxu0 0.0
        %2280 = vmatprep.subr.mxu0 0.0
        %2281 = vmatpush1.msra.mxu0 0.0
        %2282 = vmatprep.subr.mxu0 0.0
        %2283 = vmatpush1.msra.mxu0 0.0
        %2284 = vmatprep.subr.mxu0 0.0
        %2285 = vmatpush1.msra.mxu0 0.0
        %2286 = vmatprep.subr.mxu0 0.0
        %2287 = vmatpush1.msra.mxu0 0.0
        %2288 = vmatprep.subr.mxu0 0.0
        %2289 = vmatpush1.msra.mxu0 0.0
        %2290 = vmatprep.subr.mxu0 0.0
        %2291 = vmatpush1.msra.mxu0 0.0
        %2292 = vmatprep.subr.mxu0 0.0
        %2293 = vmatpush1.msra.mxu0 0.0
        %2294 = vmatprep.subr.mxu0 0.0
        %2295 = vmatpush1.msra.mxu0 0.0
        %2296 = vmatprep.subr.mxu0 0.0
        %2297 = vmatpush1.msra.mxu0 0.0
        %2298 = vmatprep.mubr.f32.mxu0 0.0
        %2299 = vmatmul.mubr.f32.gmra.mrb[0].mxu0 %v2094
        %v2300 = vpop.f32.mrb[0].mxu0
        %v2301 = vadd.f32 %v2226, %v2300
        %v2302 = vpop.f32.mrb[0].mxu0
        %2303 = vmatprep.mubr.f32.mxu0 0.0
        %2304 = vmatmul.mubr.f32.gmra.mrb[0].mxu0 %v2099
        %v2305 = vpop.f32.mrb[0].mxu0
        %v2306 = vadd.f32 %v2231, %v2305
        %v2307 = vpop.f32.mrb[0].mxu0
        %2308 = vdwg.mxu0
        %v2309 = vadd.f32 %v2301, %v2306
        %v2310 = vrot.slane %v2309, 4
        %v2311 = vadd.f32 %v2309, %v2310
        %v2312 = vrot.slane %v2311, 2
        %v2313 = vadd.f32 %v2311, %v2312
        %v2314 = vrot.slane %v2313, 1
        %v2315 = vadd.f32 %v2313, %v2314
        %2316 = vmatprep.subr.mxu0 0.0
        %2317 = vmatpush1.msra.mxu0 %v335
        %2318 = vmatprep.subr.mxu0 0.0
        %2319 = vmatpush1.msra.mxu0 %v336
        %2320 = vmatprep.subr.mxu0 0.0
        %2321 = vmatpush1.msra.mxu0 %v337
        %2322 = vmatprep.subr.mxu0 0.0
        %2323 = vmatpush1.msra.mxu0 %v338
        %2324 = vmatprep.subr.mxu0 0.0
        %2325 = vmatpush1.msra.mxu0 %v339
        %2326 = vmatprep.subr.mxu0 0.0
        %2327 = vmatpush1.msra.mxu0 %v340
        %2328 = vmatprep.subr.mxu0 0.0
        %2329 = vmatpush1.msra.mxu0 %v341
        %2330 = vmatprep.subr.mxu0 0.0
        %2331 = vmatpush1.msra.mxu0 %v342
        %2332 = vmatprep.subr.mxu0 0.0
        %2333 = vmatpush1.msra.mxu0 %v343
        %2334 = vmatprep.subr.mxu0 0.0
        %2335 = vmatpush1.msra.mxu0 %v344
        %2336 = vmatprep.subr.mxu0 0.0
        %2337 = vmatpush1.msra.mxu0 %v345
        %2338 = vmatprep.subr.mxu0 0.0
        %2339 = vmatpush1.msra.mxu0 %v346
        %2340 = vmatprep.subr.mxu0 0.0
        %2341 = vmatpush1.msra.mxu0 %v347
        %2342 = vmatprep.subr.mxu0 0.0
        %2343 = vmatpush1.msra.mxu0 %v348
        %2344 = vmatprep.subr.mxu0 0.0
        %2345 = vmatpush1.msra.mxu0 %v349
        %2346 = vmatprep.subr.mxu0 0.0
        %2347 = vmatpush1.msra.mxu0 %v350
        %2348 = vmatprep.subr.mxu0 0.0
        %2349 = vmatpush1.msra.mxu0 0.0
        %2350 = vmatprep.subr.mxu0 0.0
        %2351 = vmatpush1.msra.mxu0 0.0
        %2352 = vmatprep.subr.mxu0 0.0
        %2353 = vmatpush1.msra.mxu0 0.0
        %2354 = vmatprep.subr.mxu0 0.0
        %2355 = vmatpush1.msra.mxu0 0.0
        %2356 = vmatprep.subr.mxu0 0.0
        %2357 = vmatpush1.msra.mxu0 0.0
        %2358 = vmatprep.subr.mxu0 0.0
        %2359 = vmatpush1.msra.mxu0 0.0
        %2360 = vmatprep.subr.mxu0 0.0
        %2361 = vmatpush1.msra.mxu0 0.0
        %2362 = vmatprep.subr.mxu0 0.0
        %2363 = vmatpush1.msra.mxu0 0.0
        %2364 = vmatprep.subr.mxu0 0.0
        %2365 = vmatpush1.msra.mxu0 0.0
        %2366 = vmatprep.subr.mxu0 0.0
        %2367 = vmatpush1.msra.mxu0 0.0
        %2368 = vmatprep.subr.mxu0 0.0
        %2369 = vmatpush1.msra.mxu0 0.0
        %2370 = vmatprep.subr.mxu0 0.0
        %2371 = vmatpush1.msra.mxu0 0.0
        %2372 = vmatprep.subr.mxu0 0.0
        %2373 = vmatpush1.msra.mxu0 0.0
        %2374 = vmatprep.subr.mxu0 0.0
        %2375 = vmatpush1.msra.mxu0 0.0
        %2376 = vmatprep.subr.mxu0 0.0
        %2377 = vmatpush1.msra.mxu0 0.0
        %2378 = vmatprep.subr.mxu0 0.0
        %2379 = vmatpush1.msra.mxu0 0.0
        %2380 = vmatprep.mubr.f32.mxu0 0.0
        %2381 = vmatmul.mubr.f32.gmra.mrb[0].mxu0 %v2315
        %v2382 = vpop.f32.mrb[0].mxu0
        %v2383 = vadd.f32 0.0, %v2382
        %v2384 = vpop.f32.mrb[0].mxu0
        %2385 = vdwg.mxu0
        %v2386 = vlaneseq
        %v2387 = vshrl.u32 %v2386, 7
        %v2388 = vsub.s32 0, %v2387
        %v2389 = vrot.slane %v2383, %v2388
        %v2390 = vsub.f32 %v2301, %v2389
        %v2391 = vsub.f32 %v2306, %v2389
        %v2392 = vmul.f32 %v2390, %v2390
        %v2393 = vmul.f32 %v2391, %v2391
        %v2394 = vadd.f32 %v2392, %v2393
        %v2395 = vrot.slane %v2394, 4
        %v2396 = vadd.f32 %v2394, %v2395
        %v2397 = vrot.slane %v2396, 2
        %v2398 = vadd.f32 %v2396, %v2397
        %v2399 = vrot.slane %v2398, 1
        %v2400 = vadd.f32 %v2398, %v2399
        %2401 = vmatprep.subr.mxu0 0.0
        %2402 = vmatpush1.msra.mxu0 %v335
        %2403 = vmatprep.subr.mxu0 0.0
        %2404 = vmatpush1.msra.mxu0 %v336
        %2405 = vmatprep.subr.mxu0 0.0
        %2406 = vmatpush1.msra.mxu0 %v337
        %2407 = vmatprep.subr.mxu0 0.0
        %2408 = vmatpush1.msra.mxu0 %v338
        %2409 = vmatprep.subr.mxu0 0.0
        %2410 = vmatpush1.msra.mxu0 %v339
        %2411 = vmatprep.subr.mxu0 0.0
        %2412 = vmatpush1.msra.mxu0 %v340
        %2413 = vmatprep.subr.mxu0 0.0
        %2414 = vmatpush1.msra.mxu0 %v341
        %2415 = vmatprep.subr.mxu0 0.0
        %2416 = vmatpush1.msra.mxu0 %v342
        %2417 = vmatprep.subr.mxu0 0.0
        %2418 = vmatpush1.msra.mxu0 %v343
        %2419 = vmatprep.subr.mxu0 0.0
        %2420 = vmatpush1.msra.mxu0 %v344
        %2421 = vmatprep.subr.mxu0 0.0
        %2422 = vmatpush1.msra.mxu0 %v345
        %2423 = vmatprep.subr.mxu0 0.0
        %2424 = vmatpush1.msra.mxu0 %v346
        %2425 = vmatprep.subr.mxu0 0.0
        %2426 = vmatpush1.msra.mxu0 %v347
        %2427 = vmatprep.subr.mxu0 0.0
        %2428 = vmatpush1.msra.mxu0 %v348
        %2429 = vmatprep.subr.mxu0 0.0
        %2430 = vmatpush1.msra.mxu0 %v349
        %2431 = vmatprep.subr.mxu0 0.0
        %2432 = vmatpush1.msra.mxu0 %v350
        %2433 = vmatprep.subr.mxu0 0.0
        %2434 = vmatpush1.msra.mxu0 0.0
        %2435 = vmatprep.subr.mxu0 0.0
        %2436 = vmatpush1.msra.mxu0 0.0
        %2437 = vmatprep.subr.mxu0 0.0
        %2438 = vmatpush1.msra.mxu0 0.0
        %2439 = vmatprep.subr.mxu0 0.0
        %2440 = vmatpush1.msra.mxu0 0.0
        %2441 = vmatprep.subr.mxu0 0.0
        %2442 = vmatpush1.msra.mxu0 0.0
        %2443 = vmatprep.subr.mxu0 0.0
        %2444 = vmatpush1.msra.mxu0 0.0
        %2445 = vmatprep.subr.mxu0 0.0
        %2446 = vmatpush1.msra.mxu0 0.0
        %2447 = vmatprep.subr.mxu0 0.0
        %2448 = vmatpush1.msra.mxu0 0.0
        %2449 = vmatprep.subr.mxu0 0.0
        %2450 = vmatpush1.msra.mxu0 0.0
        %2451 = vmatprep.subr.mxu0 0.0
        %2452 = vmatpush1.msra.mxu0 0.0
        %2453 = vmatprep.subr.mxu0 0.0
        %2454 = vmatpush1.msra.mxu0 0.0
        %2455 = vmatprep.subr.mxu0 0.0
        %2456 = vmatpush1.msra.mxu0 0.0
        %2457 = vmatprep.subr.mxu0 0.0
        %2458 = vmatpush1.msra.mxu0 0.0
        %2459 = vmatprep.subr.mxu0 0.0
        %2460 = vmatpush1.msra.mxu0 0.0
        %2461 = vmatprep.subr.mxu0 0.0
        %2462 = vmatpush1.msra.mxu0 0.0
        %2463 = vmatprep.subr.mxu0 0.0
        %2464 = vmatpush1.msra.mxu0 0.0
        %2465 = vmatprep.mubr.f32.mxu0 0.0
        %2466 = vmatmul.mubr.f32.gmra.mrb[0].mxu0 %v2400
        %v2467 = vpop.f32.mrb[0].mxu0
        %v2468 = vadd.f32 1e-05, %v2467
        %v2469 = vpop.f32.mrb[0].mxu0
        %2470 = vdwg.mxu0
        %v2471 = vrsqrt.pop %v2468
        %v2472 = vlaneseq
        %v2473 = vshrl.u32 %v2472, 7
        %v2474 = vsub.s32 0, %v2473
        %v2475 = vrot.slane %v2471, %v2474
        %v2476 = vmul.f32 %v2390, %v2475
        %v2477 = vmul.f32 %v2391, %v2475
        %v2478 = vld [vmem:[#allocation2] sm:$0xff]
        %v2479 = vld [vmem:[#allocation2 + $0x8] sm:$0xff]
        %v2480 = vadd.f32 %v2476, %v2478
        %v2481 = vadd.f32 %v2477, %v2479
        %2482 = vst [vmem:[%s313] sm:$0xff] %v2480
        %2483 = vst [vmem:[%s313 + $0x8] sm:$0xff] %v2481
        %s2484 = sand.u32 %s164, 1
        %s2485 = scalar_lea.sflag [#allocation5], %s2484
        %s2486 = sand.u32 %s164, 1
        %s2487 = smul.addr %s2486, 16
        %s2488 = scalar_lea.vmem [#allocation11], %s2487
        // Predicated region
        $region61: #{tpu_custom_call.1} parent=43 // pred_check
          %p2489 = pneg %p174
        $region62: #{tpu_custom_call.1} parent=43 // pred_check_branch
          %2491 = sbr.rel (%p2489) target = $region64
        $region63: #{tpu_custom_call.1} parent=43 // pred_region
          %s2493 = ssub.s32 256, 256
          %2494 = vsyncadd %s2485, %s2493
          %s2495 = smul.addr %s25, 2
          %s2496 = smul.addr %s2495, 128
          %s2497 = scalar_lea.hbm %s6, %s2496
          %s2498 = sshll.u32 %s2488, 4
          %s2499 = int_to_ptr.vmem [resolvable:$true] %s2498
          %2504 = dma.vmem_to_hbm [thread:$0]  %s2499, 256, %s2497, %s2485, 128, 128, 8
        $region64: #{tpu_custom_call.1} parent=43 // pred_fallthru
          _
      $region44: #{tpu_custom_call.1} parent=5 // pred_fallthru
        _
      %p2505 = scmp.le.s32.totalorder 2, %s20
      // Predicated region
      $region65: #{tpu_custom_call.1} parent=5 // pred_check
        %p2506 = pneg %p2505
      $region66: #{tpu_custom_call.1} parent=5 // pred_check_branch
        %2508 = sbr.rel (%p2506) target = $region68
      $region67: #{tpu_custom_call.1} parent=5 // pred_region
        %s2509 = ssub.s32 %s20, 2
        // Predicated region
        $region69: #{tpu_custom_call.1} parent=67 // pred_check
          %p2510 = pneg %p180
        $region70: #{tpu_custom_call.1} parent=67 // pred_check_branch
          %2512 = sbr.rel (%p2510) target = $region72
        $region71: #{tpu_custom_call.1} parent=67 // pred_region
          %s2513 = sand.u32 %s165, 1
          %s2514 = scalar_lea.sflag [#allocation5], %s2513
          %s2515 = sand.u32 %s165, 1
          %s2516 = smul.addr %s2515, 16
          %s2517 = scalar_lea.vmem [#allocation11], %s2516
          %2518 = dma.done %s2514, 256
        $region72: #{tpu_custom_call.1} parent=67 // pred_fallthru
          _
      $region68: #{tpu_custom_call.1} parent=5 // pred_fallthru
        _
    $region6: #{tpu_custom_call.1} parent=1 // loop_footer
      %s24 = sadd.s32 1, %s20
    $region7: #{tpu_custom_call.1} parent=1 // loop_footer_branch
      %19 = sbr.rel target = $region3
    $region8: #{tpu_custom_call.1} parent=1 // loop_exit
      _
    %2519 = vsyncpa [#allocation4], 1
    %s2520 = scalar_lea.sflag [#allocation4], 1
    %2521 = vsyncpa %s2520, 1
    %2522 = vsyncpa [#allocation7], 1
    %2523 = vsyncpa [#allocation10], 1
    %2524 = vsyncpa [#allocation5], 1
    %s2525 = scalar_lea.sflag [#allocation5], 1
    %2526 = vsyncpa %s2525, 1

</llo_original>
